<compile_context>
chip_gen: v7x
topology: tpu7x:2x2x1
jax: 0.10.0
libtpu: 0.0.40
codegen_flags: <defaults>
</compile_context>

<pallas_src>
import functools

import jax
import jax.numpy as jnp
from jax.experimental import pallas as pl
from jax.experimental.pallas import tpu as pltpu


def _round_up(x, m):
    return ((x + m - 1) // m) * m


def _choose_tiling(n, max_tile):
    """Pick tile_n (multiple of 8, <= max_tile) giving >=2 tiles when possible.

    >=2 tiles lets the "parallel" ray axis shard across v7x's two TensorCores;
    the cap keeps the double-buffered VMEM working set (~2 KB/row after
    128-lane padding of the narrow blocks) well under the default scoped VMEM
    on every generation (v5e 16 MiB, v6e/v7x 32 MiB).
    """
    tile_n = min(max_tile, max(8, _round_up(pl.cdiv(n, 2), 8)))
    n_pad = _round_up(n, tile_n)
    return tile_n, n_pad, n_pad // tile_n


# ------------------------------ fused kernel -------------------------------

def _fused_nerf_kernel(x_ref, tgt_ref, w1_ref, b1_ref,
                       w20_ref, b20_ref, w21_ref, b21_ref,
                       rgb0_ref, rgb1_ref, part_ref, *, tile_n, n_valid):
    # x: [tile_n, D_in]            w1: [D_in, 2H]   b1: [1, 2H]
    # w20/w21: [2H, 3] zero-padded b20/b21: [1, 3]
    x = x_ref[...]
    h = jnp.dot(x, w1_ref[...], preferred_element_type=jnp.float32) + b1_ref[...]
    h = jnp.maximum(h, 0.0)                                     # ReLU (VPU)

    # Two narrow second-layer matmuls -> rgb per cascade, stored directly as
    # (tile_n, 3) blocks (full lane-width of their arrays -> contiguous DMA).
    rgb0 = jax.nn.sigmoid(
        jnp.dot(h, w20_ref[...], preferred_element_type=jnp.float32) + b20_ref[...])
    rgb1 = jax.nn.sigmoid(
        jnp.dot(h, w21_ref[...], preferred_element_type=jnp.float32) + b21_ref[...])
    rgb0_ref[...] = rgb0
    rgb1_ref[...] = rgb1

    # Per-tile MSE partial sums; mask rows beyond the true ray count.
    row = (pl.program_id(0) * tile_n
           + jax.lax.broadcasted_iota(jnp.int32, (tile_n, 1), 0))
    valid = (row < n_valid).astype(jnp.float32)                 # [tile_n, 1]
    tgt = tgt_ref[...]                                          # [tile_n, 3]
    d0 = (rgb0 - tgt) * valid
    d1 = (rgb1 - tgt) * valid
    s0 = jnp.sum(d0 * d0)                                       # XLU reduce
    s1 = jnp.sum(d1 * d1)

    # (8,128)-aligned per-tile partials: lane 0 -> cascade 0, lane 1 -> cascade
    # 1 (value replicated over sublanes; wrapper reads [tile, 0, k]).
    lane = jax.lax.broadcasted_iota(jnp.int32, (8, 128), 1)
    part_ref[0] = jnp.where(lane == 0, s0,
                            jnp.where(lane == 1, s1, jnp.float32(0.0)))


def fused_nerf_forward(rays, rgb_target, w1_cat, b1_cat,
                       w2_0p, b2_0, w2_1p, b2_1, *, max_tile=2048):
    """Both cascades' MLPs + MSE partial sums in one gridded pallas_call."""
    n, d_in = rays.shape
    tile_n, n_pad, num_tiles = _choose_tiling(n, max_tile)
    if n_pad != n:
        rays = jnp.pad(rays, ((0, n_pad - n), (0, 0)))
        rgb_target = jnp.pad(rgb_target, ((0, n_pad - n), (0, 0)))
    h2 = w1_cat.shape[1]

    kernel = functools.partial(_fused_nerf_kernel, tile_n=tile_n, n_valid=n)

    rgb0, rgb1, partials = pl.pallas_call(
        kernel,
        out_shape=(
            jax.ShapeDtypeStruct((n_pad, 3), jnp.float32),         # rgb_0
            jax.ShapeDtypeStruct((n_pad, 3), jnp.float32),         # rgb_1
            jax.ShapeDtypeStruct((num_tiles, 8, 128), jnp.float32),  # partials
        ),
        grid=(num_tiles,),
        in_specs=[
            pl.BlockSpec((tile_n, d_in), lambda i: (i, 0)),  # rays (tiled)
            pl.BlockSpec((tile_n, 3), lambda i: (i, 0)),     # target rgb (tiled)
            pl.BlockSpec((d_in, h2), lambda i: (0, 0)),      # w1_cat (resident)
            pl.BlockSpec((1, h2), lambda i: (0, 0)),         # b1_cat
            pl.BlockSpec((h2, 3), lambda i: (0, 0)),         # w2 cascade 0 (padded)
            pl.BlockSpec((1, 3), lambda i: (0, 0)),          # b2 cascade 0
            pl.BlockSpec((h2, 3), lambda i: (0, 0)),         # w2 cascade 1 (padded)
            pl.BlockSpec((1, 3), lambda i: (0, 0)),          # b2 cascade 1
        ],
        out_specs=(
            pl.BlockSpec((tile_n, 3), lambda i: (i, 0)),
            pl.BlockSpec((tile_n, 3), lambda i: (i, 0)),
            pl.BlockSpec((1, 8, 128), lambda i: (i, 0, 0)),
        ),
        compiler_params=pltpu.CompilerParams(
            dimension_semantics=("parallel",),
            vmem_limit_bytes=32 * 1024 * 1024),
    )(rays, rgb_target, w1_cat, b1_cat, w2_0p, b2_0, w2_1p, b2_1)

    if n_pad != n:
        rgb0 = rgb0[:n]
        rgb1 = rgb1[:n]
    denom = jnp.float32(n * 3)  # nn.MSELoss(reduction='mean') over all N*3 elems
    mse_0 = jnp.sum(partials[:, 0, 0]) / denom
    mse_1 = jnp.sum(partials[:, 0, 1]) / denom
    return rgb0, rgb1, mse_0, mse_1


def _forward_impl(rays, rgb_target, w1_cat, b1_cat, w2_0p, b2_0, w2_1p, b2_1,
                  *, max_tile):
    """Full NetworkWrapper.forward: net + losses + stats (jitted as a whole)."""
    rgb_0, rgb_1, mse_0, mse_1 = fused_nerf_forward(
        rays, rgb_target, w1_cat, b1_cat, w2_0p, b2_0, w2_1p, b2_1,
        max_tile=max_tile)

    output = {'rgb_0': rgb_0, 'rgb_1': rgb_1}
    scalar_stats = {}
    log10 = jnp.log(jnp.float32(10.0))
    loss = jnp.float32(0.0)

    # cascade 0
    scalar_stats['color_mse_0'] = mse_0
    loss = loss + mse_0
    scalar_stats['psnr_0'] = -10.0 * jnp.log(jax.lax.stop_gradient(mse_0)) / log10

    # cascade 1 (len(cfg.task_arg.cascade_samples) > 1 assumed)
    scalar_stats['color_mse_1'] = mse_1
    loss = loss + mse_1
    scalar_stats['psnr_1'] = -10.0 * jnp.log(jax.lax.stop_gradient(mse_1)) / log10

    scalar_stats['loss'] = loss
    image_stats = {}
    return output, loss, scalar_stats, image_stats


# ----------------------------- NetworkWrapper ------------------------------

class NetworkWrapperPallas:
    """JAX/Pallas equivalent of lib/train/losses/nerf.py::NetworkWrapper.

    The wrapped `net` is a deterministic 2-cascade per-ray MLP stand-in
    (matmul -> relu -> matmul -> sigmoid per cascade), fused with the MSE loss.
    """

    def __init__(self, d_in=32, hidden=32, seed=0, max_tile=2048):
        self.d_in = d_in
        self.hidden = hidden
        key = jax.random.PRNGKey(seed)
        ks = jax.random.split(key, 8)
        s1 = 1.0 / jnp.sqrt(jnp.float32(d_in))
        s2 = 1.0 / jnp.sqrt(jnp.float32(hidden))
        # Two cascades (coarse / fine), deterministically initialized.
        self.params = []
        for c in range(2):
            w1 = jax.random.normal(ks[4 * c + 0], (d_in, hidden), jnp.float32) * s1
            b1 = jax.random.normal(ks[4 * c + 1], (1, hidden), jnp.float32) * 0.01
            w2 = jax.random.normal(ks[4 * c + 2], (hidden, 3), jnp.float32) * s2
            b2 = jax.random.normal(ks[4 * c + 3], (1, 3), jnp.float32) * 0.01
            self.params.append((w1, b1, w2, b2))

        # Fused weight layout: one [D_in, 2H] first layer; two zero-padded
        # [2H, 3] second layers so each cascade reads only its half of h.
        (w1_0, b1_0, w2_0, b2_0), (w1_1, b1_1, w2_1, b2_1) = self.params
        self.w1_cat = jnp.concatenate([w1_0, w1_1], axis=1)          # [D_in, 2H]
        self.b1_cat = jnp.concatenate([b1_0, b1_1], axis=1)          # [1, 2H]
        self.w2_0p = jnp.zeros((2 * hidden, 3), jnp.float32).at[:hidden].set(w2_0)
        self.w2_1p = jnp.zeros((2 * hidden, 3), jnp.float32).at[hidden:].set(w2_1)
        self.b2_0 = b2_0                                              # [1, 3]
        self.b2_1 = b2_1                                              # [1, 3]

        # jit the whole forward path so padding, partial-sum reduction, PSNR /
        # loss glue and row trimming fuse with the kernel launch.
        self._forward_jit = jax.jit(
            functools.partial(_forward_impl, max_tile=max_tile))

    def forward(self, batch):
        return self._forward_jit(
            batch['rays'], batch['rgb'],
            self.w1_cat, self.b1_cat,
            self.w2_0p, self.b2_0, self.w2_1p, self.b2_1)


# ---------------------------------- main -----------------------------------

if __name__ == "__main__":
    N, D_IN, HIDDEN = 256, 32, 32
    key = jax.random.PRNGKey(0)
    k_rays, k_rgb = jax.random.split(key)
    batch = {
        'rays': jax.random.normal(k_rays, (N, D_IN), jnp.float32),
        'rgb': jax.random.uniform(k_rgb, (N, 3), jnp.float32),
    }

    wrapper = NetworkWrapperPallas(d_in=D_IN, hidden=HIDDEN, seed=0)
    output, loss, scalar_stats, image_stats = wrapper.forward(batch)
    jax.block_until_ready(loss)
    jax.block_until_ready(output['rgb_0'])
    jax.block_until_ready(output['rgb_1'])
    jax.block_until_ready(scalar_stats['psnr_1'])

    # sanity check against pure-JAX reference
    def ref_mlp(x, w1, b1, w2, b2):
        h = jnp.maximum(jnp.dot(x, w1) + b1, 0.0)
        return jax.nn.sigmoid(jnp.dot(h, w2) + b2)

    ref0 = ref_mlp(batch['rays'], *wrapper.params[0])
    ref1 = ref_mlp(batch['rays'], *wrapper.params[1])
    assert output['rgb_0'].shape == (N, 3) and output['rgb_1'].shape == (N, 3)
    assert jnp.allclose(output['rgb_0'], ref0, rtol=1e-4, atol=1e-4), "rgb_0 mismatch"
    assert jnp.allclose(output['rgb_1'], ref1, rtol=1e-4, atol=1e-4), "rgb_1 mismatch"
    ref_mse_0 = jnp.mean((ref0 - batch['rgb']) ** 2)
    ref_mse_1 = jnp.mean((ref1 - batch['rgb']) ** 2)
    ref_loss = ref_mse_0 + ref_mse_1
    assert jnp.allclose(loss, ref_loss, rtol=1e-4, atol=1e-6), (loss, ref_loss)
    assert jnp.allclose(scalar_stats['color_mse_0'], ref_mse_0, rtol=1e-4, atol=1e-6)
    assert jnp.allclose(scalar_stats['color_mse_1'], ref_mse_1, rtol=1e-4, atol=1e-6)

    print("KERNEL_OK")
</pallas_src>

<mosaic_0001>
module attributes {stable_mosaic.version = 11 : i64} {
  func.func @_fused_nerf_kernel(%arg0: i32, %arg1: memref<128x32xf32, #tpu.memory_space<vmem>>, %arg2: memref<128x3xf32, #tpu.memory_space<vmem>>, %arg3: memref<32x64xf32, #tpu.memory_space<vmem>>, %arg4: memref<1x64xf32, #tpu.memory_space<vmem>>, %arg5: memref<64x3xf32, #tpu.memory_space<vmem>>, %arg6: memref<1x3xf32, #tpu.memory_space<vmem>>, %arg7: memref<64x3xf32, #tpu.memory_space<vmem>>, %arg8: memref<1x3xf32, #tpu.memory_space<vmem>>, %arg9: memref<128x3xf32, #tpu.memory_space<vmem>>, %arg10: memref<128x3xf32, #tpu.memory_space<vmem>>, %arg11: memref<1x8x128xf32, #tpu.memory_space<vmem>>) attributes {dimension_semantics = [#tpu.dimension_semantics<parallel>], iteration_bounds = array<i64: 2>, scalar_prefetch = 0 : i64, scratch_operands = 0 : i64, tpu.core_type = #tpu.core_type<tc>, window_params = [{transform_indices = @transform_0, window_bounds = array<i64: 128, 32>}, {transform_indices = @transform_1, window_bounds = array<i64: 128, 3>}, {pipeline_mode = #tpu.pipeline_mode<synchronous>, transform_indices = @transform_2, window_bounds = array<i64: 32, 64>}, {pipeline_mode = #tpu.pipeline_mode<synchronous>, transform_indices = @transform_3, window_bounds = array<i64: 1, 64>}, {pipeline_mode = #tpu.pipeline_mode<synchronous>, transform_indices = @transform_4, window_bounds = array<i64: 64, 3>}, {pipeline_mode = #tpu.pipeline_mode<synchronous>, transform_indices = @transform_5, window_bounds = array<i64: 1, 3>}, {pipeline_mode = #tpu.pipeline_mode<synchronous>, transform_indices = @transform_6, window_bounds = array<i64: 64, 3>}, {pipeline_mode = #tpu.pipeline_mode<synchronous>, transform_indices = @transform_7, window_bounds = array<i64: 1, 3>}, {transform_indices = @transform_8, window_bounds = array<i64: 128, 3>}, {transform_indices = @transform_9, window_bounds = array<i64: 128, 3>}, {transform_indices = @transform_10, window_bounds = array<i64: 1, 8, 128>}]} {
    %c0 = arith.constant 0 : index
    %c0_0 = arith.constant 0 : index
    %0 = vector.load %arg1[%c0, %c0_0] : memref<128x32xf32, #tpu.memory_space<vmem>>, vector<128x32xf32>
    %c0_1 = arith.constant 0 : index
    %c0_2 = arith.constant 0 : index
    %1 = vector.load %arg3[%c0_1, %c0_2] : memref<32x64xf32, #tpu.memory_space<vmem>>, vector<32x64xf32>
    %cst = arith.constant dense<0.000000e+00> : vector<128x64xf32>
    %2 = tpu.matmul %0, %1, %cst {dimension_numbers = #tpu.dot_dimension_numbers<[1], [0], [0], [1], [0, 0, 1, 1], [], []>} : vector<128x32xf32>, vector<32x64xf32>, vector<128x64xf32> -> vector<128x64xf32>
    %c0_3 = arith.constant 0 : index
    %c0_4 = arith.constant 0 : index
    %3 = vector.load %arg4[%c0_3, %c0_4] : memref<1x64xf32, #tpu.memory_space<vmem>>, vector<1x64xf32>
    %4 = vector.broadcast %3 : vector<1x64xf32> to vector<128x64xf32>
    %5 = arith.addf %2, %4 : vector<128x64xf32>
    %cst_5 = arith.constant 0.000000e+00 : f32
    %6 = vector.broadcast %cst_5 : f32 to vector<128x64xf32>
    %7 = arith.maximumf %5, %6 : vector<128x64xf32>
    %c0_6 = arith.constant 0 : index
    %c0_7 = arith.constant 0 : index
    %8 = vector.load %arg5[%c0_6, %c0_7] : memref<64x3xf32, #tpu.memory_space<vmem>>, vector<64x3xf32>
    %cst_8 = arith.constant dense<0.000000e+00> : vector<128x3xf32>
    %9 = tpu.matmul %7, %8, %cst_8 {dimension_numbers = #tpu.dot_dimension_numbers<[1], [0], [0], [1], [0, 0, 1, 1], [], []>} : vector<128x64xf32>, vector<64x3xf32>, vector<128x3xf32> -> vector<128x3xf32>
    %c0_9 = arith.constant 0 : index
    %c0_10 = arith.constant 0 : index
    %10 = vector.load %arg6[%c0_9, %c0_10] : memref<1x3xf32, #tpu.memory_space<vmem>>, vector<1x3xf32>
    %11 = vector.broadcast %10 : vector<1x3xf32> to vector<128x3xf32>
    %12 = arith.addf %9, %11 : vector<128x3xf32>
    %13 = arith.negf %12 : vector<128x3xf32>
    %14 = math.exp %13 : vector<128x3xf32>
    %cst_11 = arith.constant 1.000000e+00 : f32
    %15 = vector.broadcast %cst_11 : f32 to vector<128x3xf32>
    %16 = arith.addf %15, %14 : vector<128x3xf32>
    %17 = arith.divf %15, %16 : vector<128x3xf32>
    %c0_12 = arith.constant 0 : index
    %c0_13 = arith.constant 0 : index
    %18 = vector.load %arg7[%c0_12, %c0_13] : memref<64x3xf32, #tpu.memory_space<vmem>>, vector<64x3xf32>
    %cst_14 = arith.constant dense<0.000000e+00> : vector<128x3xf32>
    %19 = tpu.matmul %7, %18, %cst_14 {dimension_numbers = #tpu.dot_dimension_numbers<[1], [0], [0], [1], [0, 0, 1, 1], [], []>} : vector<128x64xf32>, vector<64x3xf32>, vector<128x3xf32> -> vector<128x3xf32>
    %c0_15 = arith.constant 0 : index
    %c0_16 = arith.constant 0 : index
    %20 = vector.load %arg8[%c0_15, %c0_16] : memref<1x3xf32, #tpu.memory_space<vmem>>, vector<1x3xf32>
    %21 = vector.broadcast %20 : vector<1x3xf32> to vector<128x3xf32>
    %22 = arith.addf %19, %21 : vector<128x3xf32>
    %23 = arith.negf %22 : vector<128x3xf32>
    %24 = math.exp %23 : vector<128x3xf32>
    %cst_17 = arith.constant 1.000000e+00 : f32
    %25 = vector.broadcast %cst_17 : f32 to vector<128x3xf32>
    %26 = arith.addf %25, %24 : vector<128x3xf32>
    %27 = arith.divf %25, %26 : vector<128x3xf32>
    %c0_18 = arith.constant 0 : index
    %c0_19 = arith.constant 0 : index
    %28 = vector.load %arg9[%c0_18, %c0_19] : memref<128x3xf32, #tpu.memory_space<vmem>>, vector<128x3xf32>
    tpu.vector_store %arg9[%c0_18, %c0_19], %17 {strides = array<i32>} : memref<128x3xf32, #tpu.memory_space<vmem>>, vector<128x3xf32>,
    %c0_20 = arith.constant 0 : index
    %c0_21 = arith.constant 0 : index
    %29 = vector.load %arg10[%c0_20, %c0_21] : memref<128x3xf32, #tpu.memory_space<vmem>>, vector<128x3xf32>
    tpu.vector_store %arg10[%c0_20, %c0_21], %27 {strides = array<i32>} : memref<128x3xf32, #tpu.memory_space<vmem>>, vector<128x3xf32>,
    %c128_i32 = arith.constant 128 : i32
    %30 = arith.muli %arg0, %c128_i32 : i32
    %31 = tpu.iota {dimensions = array<i32: 0>} : vector<128x1xi32>
    %32 = vector.broadcast %30 : i32 to vector<128x1xi32>
    %33 = arith.addi %32, %31 : vector<128x1xi32>
    %c256_i32 = arith.constant 256 : i32
    %34 = vector.broadcast %c256_i32 : i32 to vector<128x1xi32>
    %35 = arith.cmpi slt, %33, %34 : vector<128x1xi32>
    %36 = arith.extui %35 : vector<128x1xi1> to vector<128x1xi32>
    %37 = arith.sitofp %36 : vector<128x1xi32> to vector<128x1xf32>
    %c0_22 = arith.constant 0 : index
    %c0_23 = arith.constant 0 : index
    %38 = vector.load %arg2[%c0_22, %c0_23] : memref<128x3xf32, #tpu.memory_space<vmem>>, vector<128x3xf32>
    %39 = arith.subf %17, %38 : vector<128x3xf32>
    %40 = vector.broadcast %37 : vector<128x1xf32> to vector<128x3xf32>
    %41 = arith.mulf %39, %40 : vector<128x3xf32>
    %42 = arith.subf %27, %38 : vector<128x3xf32>
    %43 = vector.broadcast %37 : vector<128x1xf32> to vector<128x3xf32>
    %44 = arith.mulf %42, %43 : vector<128x3xf32>
    %45 = arith.mulf %41, %41 : vector<128x3xf32>
    %46 = vector.shape_cast %45 : vector<128x3xf32> to vector<1x128x3xf32>
    %cst_24 = arith.constant dense<0.000000e+00> : vector<1xf32>
    %47 = vector.multi_reduction <add>, %46, %cst_24 [1, 2] : vector<1x128x3xf32> to vector<1xf32>
    %48 = vector.shape_cast %47 : vector<1xf32> to vector<1x1x1xf32>
    %49 = vector.extract %48[0, 0, 0] : f32 from vector<1x1x1xf32>
    %50 = arith.mulf %44, %44 : vector<128x3xf32>
    %51 = vector.shape_cast %50 : vector<128x3xf32> to vector<1x128x3xf32>
    %cst_25 = arith.constant dense<0.000000e+00> : vector<1xf32>
    %52 = vector.multi_reduction <add>, %51, %cst_25 [1, 2] : vector<1x128x3xf32> to vector<1xf32>
    %53 = vector.shape_cast %52 : vector<1xf32> to vector<1x1x1xf32>
    %54 = vector.extract %53[0, 0, 0] : f32 from vector<1x1x1xf32>
    %55 = tpu.iota {dimensions = array<i32: 1>} : vector<8x128xi32>
    %c0_i32 = arith.constant 0 : i32
    %56 = vector.broadcast %c0_i32 : i32 to vector<8x128xi32>
    %57 = arith.cmpi eq, %55, %56 : vector<8x128xi32>
    %c1_i32 = arith.constant 1 : i32
    %58 = vector.broadcast %c1_i32 : i32 to vector<8x128xi32>
    %59 = arith.cmpi eq, %55, %58 : vector<8x128xi32>
    %cst_26 = arith.constant 0.000000e+00 : f32
    %60 = vector.broadcast %54 : f32 to vector<8x128xf32>
    %61 = vector.broadcast %cst_26 : f32 to vector<8x128xf32>
    %62 = arith.select %59, %60, %61 : vector<8x128xi1>, vector<8x128xf32>
    %63 = vector.broadcast %49 : f32 to vector<8x128xf32>
    %64 = arith.select %57, %63, %62 : vector<8x128xi1>, vector<8x128xf32>
    %c0_27 = arith.constant 0 : index
    %c0_28 = arith.constant 0 : index
    %c0_29 = arith.constant 0 : index
    %65 = vector.load %arg11[%c0_27, %c0_28, %c0_29] : memref<1x8x128xf32, #tpu.memory_space<vmem>>, vector<1x8x128xf32>
    %66 = vector.shape_cast %65 : vector<1x8x128xf32> to vector<8x128xf32>
    %67 = vector.shape_cast %64 : vector<8x128xf32> to vector<1x8x128xf32>
    tpu.vector_store %arg11[%c0_27, %c0_28, %c0_29], %67 {strides = array<i32>} : memref<1x8x128xf32, #tpu.memory_space<vmem>>, vector<1x8x128xf32>,
    return
  }
  func.func @transform_0(%arg0: i32) -> (i32, i32) {
    %c0_i32 = arith.constant 0 : i32
    %c0_i32_0 = arith.constant 0 : i32
    return %arg0, %c0_i32 : i32, i32
  }
  func.func @transform_1(%arg0: i32) -> (i32, i32) {
    %c0_i32 = arith.constant 0 : i32
    %c0_i32_0 = arith.constant 0 : i32
    return %arg0, %c0_i32 : i32, i32
  }
  func.func @transform_2(%arg0: i32) -> (i32, i32) {
    %c0_i32 = arith.constant 0 : i32
    %c0_i32_0 = arith.constant 0 : i32
    %c0_i32_1 = arith.constant 0 : i32
    return %c0_i32, %c0_i32_0 : i32, i32
  }
  func.func @transform_3(%arg0: i32) -> (i32, i32) {
    %c0_i32 = arith.constant 0 : i32
    %c0_i32_0 = arith.constant 0 : i32
    %c0_i32_1 = arith.constant 0 : i32
    return %c0_i32, %c0_i32_0 : i32, i32
  }
  func.func @transform_4(%arg0: i32) -> (i32, i32) {
    %c0_i32 = arith.constant 0 : i32
    %c0_i32_0 = arith.constant 0 : i32
    %c0_i32_1 = arith.constant 0 : i32
    return %c0_i32, %c0_i32_0 : i32, i32
  }
  func.func @transform_5(%arg0: i32) -> (i32, i32) {
    %c0_i32 = arith.constant 0 : i32
    %c0_i32_0 = arith.constant 0 : i32
    %c0_i32_1 = arith.constant 0 : i32
    return %c0_i32, %c0_i32_0 : i32, i32
  }
  func.func @transform_6(%arg0: i32) -> (i32, i32) {
    %c0_i32 = arith.constant 0 : i32
    %c0_i32_0 = arith.constant 0 : i32
    %c0_i32_1 = arith.constant 0 : i32
    return %c0_i32, %c0_i32_0 : i32, i32
  }
  func.func @transform_7(%arg0: i32) -> (i32, i32) {
    %c0_i32 = arith.constant 0 : i32
    %c0_i32_0 = arith.constant 0 : i32
    %c0_i32_1 = arith.constant 0 : i32
    return %c0_i32, %c0_i32_0 : i32, i32
  }
  func.func @transform_8(%arg0: i32) -> (i32, i32) {
    %c0_i32 = arith.constant 0 : i32
    %c0_i32_0 = arith.constant 0 : i32
    return %arg0, %c0_i32 : i32, i32
  }
  func.func @transform_9(%arg0: i32) -> (i32, i32) {
    %c0_i32 = arith.constant 0 : i32
    %c0_i32_0 = arith.constant 0 : i32
    return %arg0, %c0_i32 : i32, i32
  }
  func.func @transform_10(%arg0: i32) -> (i32, i32, i32) {
    %c0_i32 = arith.constant 0 : i32
    %c0_i32_0 = arith.constant 0 : i32
    %c0_i32_1 = arith.constant 0 : i32
    return %arg0, %c0_i32, %c0_i32_0 : i32, i32, i32
  }
}

</mosaic_0001>

<llo_original>
// kernel: _forward_impl.1
$region0: #{_forward_impl.1}
  #allocation0 [shape = 'u32[]', space=smem, size = 0x4, offset = 0x4, fixed_abs, tag = 'smem constant byte address 0x4 - core index']
  #allocation1 [shape = 'u32[144,128]{1,0:T(1,128)}', space=vmem, size = 0x12000, scoped, tag = 'internal scratch']
  %s0 = inlined_call_operand.vmem [shape: f32[256,32], index: 0, kind: input, shape index: {}]
  %s1 = inlined_call_operand.vmem [shape: f32[256,3], index: 1, kind: input, shape index: {}]
  %s2 = inlined_call_operand.vmem [shape: f32[32,64], index: 2, kind: input, shape index: {}]
  %s3 = inlined_call_operand.vmem [shape: f32[1,64], index: 3, kind: input, shape index: {}]
  %s4 = inlined_call_operand.vmem [shape: f32[64,3], index: 4, kind: input, shape index: {}]
  %s5 = inlined_call_operand.vmem [shape: f32[1,3], index: 5, kind: input, shape index: {}]
  %s6 = inlined_call_operand.vmem [shape: f32[64,3], index: 6, kind: input, shape index: {}]
  %s7 = inlined_call_operand.vmem [shape: f32[1,3], index: 7, kind: input, shape index: {}]
  %s8 = inlined_call_operand.vmem [shape: f32[256,3], index: 8, kind: output, shape index: {0}]
  %s9 = inlined_call_operand.vmem [shape: f32[256,3], index: 9, kind: output, shape index: {1}]
  %s10 = inlined_call_operand.vmem [shape: f32[2,8,128], index: 10, kind: output, shape index: {2}]
  %11 = xla_tuple %s8, %s9, %s10
  %s12 = sld [smem:[#allocation0]]
  $region81: #{_forward_impl.1} parent=0
    _
  %s14 = ssub.s32 1, %s12
  %s15 = scalar_select 0, %s14, %s12
  loop: start=0, step=1, limit=4
  $region2: #{_forward_impl.1} parent=0 // loop_pre_header
    _
  $region3: #{_forward_impl.1} parent=0 // loop_header
    %s17 = sphi 0, %s21
    %p18 = scmp.ge.s32.totalorder %s17, 4
    %s27 = sphi 0, %s29
    %s30 = sphi 0, %s27
    %s31 = sphi 0, %s30
    %s47 = sphi 0, %s31
    %s53 = sphi 0, %s55
    %s56 = sphi 0, %s53
    %s57 = sphi 0, %s56
    %s73 = sphi 0, %s57
    %s77 = sphi 0, %s77
    %s79 = sphi 0, %s77
    %s80 = sphi 0, %s79
    %s94 = sphi 0, %s80
    %s98 = sphi 0, %s98
    %s100 = sphi 0, %s98
    %s101 = sphi 0, %s100
    %s115 = sphi 0, %s101
    %s119 = sphi 0, %s119
    %s121 = sphi 0, %s119
    %s122 = sphi 0, %s121
    %s136 = sphi 0, %s122
    %s140 = sphi 0, %s140
    %s142 = sphi 0, %s140
    %s143 = sphi 0, %s142
    %s157 = sphi 0, %s143
    %s161 = sphi 0, %s161
    %s163 = sphi 0, %s161
    %s164 = sphi 0, %s163
    %s178 = sphi 0, %s164
    %s182 = sphi 0, %s182
    %s184 = sphi 0, %s182
    %s185 = sphi 0, %s184
    %s199 = sphi 0, %s185
    %s205 = sphi 0, %s207
    %s208 = sphi 0, %s205
    %s209 = sphi 0, %s208
    %s225 = sphi 0, %s209
    %s231 = sphi 0, %s233
    %s234 = sphi 0, %s231
    %s235 = sphi 0, %s234
    %s251 = sphi 0, %s235
    %s257 = sphi 0, %s259
    %s260 = sphi 0, %s257
    %s261 = sphi 0, %s260
    %s277 = sphi 0, %s261
  $region4: #{_forward_impl.1} parent=0 // loop_header_branch
    %20 = sbr.rel (%p18) target = $region8
  $region5: #{_forward_impl.1} parent=0 // loop_body
    %s22 = ssub.s32 %s17, 1
    %s23 = ssub.s32 %s17, 2
    %s24 = sadd.s32 %s17, 1
    %s25 = ssub.s32 %s17, %s24
    %p26 = scmp.eq.s32.totalorder %s25, 0
    %s28 = sadd.s32 %s27, 1
    %s29 = scalar_select %p26, %s27, %s28
    %p32 = pneg %p26
    %p33 = scmp.eq.s32.totalorder %s17, 1
    %p34 = por %p32, %p33
    %p35 = scmp.ne.s32.totalorder %s27, %s30
    %p36 = scmp.eq.s32.totalorder %s17, 0
    %p37 = por %p35, %p36
    %p38 = scmp.ne.s32.totalorder %s27, %s30
    %p39 = scmp.eq.s32.totalorder %s22, 1
    %p40 = por %p38, %p39
    %p41 = scmp.ne.s32.totalorder %s30, %s31
    %p42 = scmp.eq.s32.totalorder %s22, 0
    %p43 = por %p41, %p42
    %p44 = scmp.ne.s32.totalorder %s30, %s31
    %p45 = scmp.eq.s32.totalorder %s23, 1
    %p46 = por %p44, %p45
    %p48 = scmp.ne.s32.totalorder %s31, %s47
    %p49 = scmp.eq.s32.totalorder %s23, 0
    %p50 = por %p48, %p49
    %s51 = ssub.s32 %s17, %s24
    %p52 = scmp.eq.s32.totalorder %s51, 0
    %s54 = sadd.s32 %s53, 1
    %s55 = scalar_select %p52, %s53, %s54
    %p58 = pneg %p52
    %p59 = scmp.eq.s32.totalorder %s17, 1
    %p60 = por %p58, %p59
    %p61 = scmp.ne.s32.totalorder %s53, %s56
    %p62 = scmp.eq.s32.totalorder %s17, 0
    %p63 = por %p61, %p62
    %p64 = scmp.ne.s32.totalorder %s53, %s56
    %p65 = scmp.eq.s32.totalorder %s22, 1
    %p66 = por %p64, %p65
    %p67 = scmp.ne.s32.totalorder %s56, %s57
    %p68 = scmp.eq.s32.totalorder %s22, 0
    %p69 = por %p67, %p68
    %p70 = scmp.ne.s32.totalorder %s56, %s57
    %p71 = scmp.eq.s32.totalorder %s23, 1
    %p72 = por %p70, %p71
    %p74 = scmp.ne.s32.totalorder %s57, %s73
    %p75 = scmp.eq.s32.totalorder %s23, 0
    %p76 = por %p74, %p75
    %s78 = sadd.s32 %s77, 1
    %p81 = scmp.eq.s32.totalorder %s17, 1
    %p82 = scmp.ne.s32.totalorder %s77, %s79
    %p83 = scmp.eq.s32.totalorder %s17, 0
    %p84 = por %p82, %p83
    %p85 = scmp.ne.s32.totalorder %s77, %s79
    %p86 = scmp.eq.s32.totalorder %s22, 1
    %p87 = por %p85, %p86
    %p88 = scmp.ne.s32.totalorder %s79, %s80
    %p89 = scmp.eq.s32.totalorder %s22, 0
    %p90 = por %p88, %p89
    %p91 = scmp.ne.s32.totalorder %s79, %s80
    %p92 = scmp.eq.s32.totalorder %s23, 1
    %p93 = por %p91, %p92
    %p95 = scmp.ne.s32.totalorder %s80, %s94
    %p96 = scmp.eq.s32.totalorder %s23, 0
    %p97 = por %p95, %p96
    %s99 = sadd.s32 %s98, 1
    %p102 = scmp.eq.s32.totalorder %s17, 1
    %p103 = scmp.ne.s32.totalorder %s98, %s100
    %p104 = scmp.eq.s32.totalorder %s17, 0
    %p105 = por %p103, %p104
    %p106 = scmp.ne.s32.totalorder %s98, %s100
    %p107 = scmp.eq.s32.totalorder %s22, 1
    %p108 = por %p106, %p107
    %p109 = scmp.ne.s32.totalorder %s100, %s101
    %p110 = scmp.eq.s32.totalorder %s22, 0
    %p111 = por %p109, %p110
    %p112 = scmp.ne.s32.totalorder %s100, %s101
    %p113 = scmp.eq.s32.totalorder %s23, 1
    %p114 = por %p112, %p113
    %p116 = scmp.ne.s32.totalorder %s101, %s115
    %p117 = scmp.eq.s32.totalorder %s23, 0
    %p118 = por %p116, %p117
    %s120 = sadd.s32 %s119, 1
    %p123 = scmp.eq.s32.totalorder %s17, 1
    %p124 = scmp.ne.s32.totalorder %s119, %s121
    %p125 = scmp.eq.s32.totalorder %s17, 0
    %p126 = por %p124, %p125
    %p127 = scmp.ne.s32.totalorder %s119, %s121
    %p128 = scmp.eq.s32.totalorder %s22, 1
    %p129 = por %p127, %p128
    %p130 = scmp.ne.s32.totalorder %s121, %s122
    %p131 = scmp.eq.s32.totalorder %s22, 0
    %p132 = por %p130, %p131
    %p133 = scmp.ne.s32.totalorder %s121, %s122
    %p134 = scmp.eq.s32.totalorder %s23, 1
    %p135 = por %p133, %p134
    %p137 = scmp.ne.s32.totalorder %s122, %s136
    %p138 = scmp.eq.s32.totalorder %s23, 0
    %p139 = por %p137, %p138
    %s141 = sadd.s32 %s140, 1
    %p144 = scmp.eq.s32.totalorder %s17, 1
    %p145 = scmp.ne.s32.totalorder %s140, %s142
    %p146 = scmp.eq.s32.totalorder %s17, 0
    %p147 = por %p145, %p146
    %p148 = scmp.ne.s32.totalorder %s140, %s142
    %p149 = scmp.eq.s32.totalorder %s22, 1
    %p150 = por %p148, %p149
    %p151 = scmp.ne.s32.totalorder %s142, %s143
    %p152 = scmp.eq.s32.totalorder %s22, 0
    %p153 = por %p151, %p152
    %p154 = scmp.ne.s32.totalorder %s142, %s143
    %p155 = scmp.eq.s32.totalorder %s23, 1
    %p156 = por %p154, %p155
    %p158 = scmp.ne.s32.totalorder %s143, %s157
    %p159 = scmp.eq.s32.totalorder %s23, 0
    %p160 = por %p158, %p159
    %s162 = sadd.s32 %s161, 1
    %p165 = scmp.eq.s32.totalorder %s17, 1
    %p166 = scmp.ne.s32.totalorder %s161, %s163
    %p167 = scmp.eq.s32.totalorder %s17, 0
    %p168 = por %p166, %p167
    %p169 = scmp.ne.s32.totalorder %s161, %s163
    %p170 = scmp.eq.s32.totalorder %s22, 1
    %p171 = por %p169, %p170
    %p172 = scmp.ne.s32.totalorder %s163, %s164
    %p173 = scmp.eq.s32.totalorder %s22, 0
    %p174 = por %p172, %p173
    %p175 = scmp.ne.s32.totalorder %s163, %s164
    %p176 = scmp.eq.s32.totalorder %s23, 1
    %p177 = por %p175, %p176
    %p179 = scmp.ne.s32.totalorder %s164, %s178
    %p180 = scmp.eq.s32.totalorder %s23, 0
    %p181 = por %p179, %p180
    %s183 = sadd.s32 %s182, 1
    %p186 = scmp.eq.s32.totalorder %s17, 1
    %p187 = scmp.ne.s32.totalorder %s182, %s184
    %p188 = scmp.eq.s32.totalorder %s17, 0
    %p189 = por %p187, %p188
    %p190 = scmp.ne.s32.totalorder %s182, %s184
    %p191 = scmp.eq.s32.totalorder %s22, 1
    %p192 = por %p190, %p191
    %p193 = scmp.ne.s32.totalorder %s184, %s185
    %p194 = scmp.eq.s32.totalorder %s22, 0
    %p195 = por %p193, %p194
    %p196 = scmp.ne.s32.totalorder %s184, %s185
    %p197 = scmp.eq.s32.totalorder %s23, 1
    %p198 = por %p196, %p197
    %p200 = scmp.ne.s32.totalorder %s185, %s199
    %p201 = scmp.eq.s32.totalorder %s23, 0
    %p202 = por %p200, %p201
    %s203 = ssub.s32 %s17, %s24
    %p204 = scmp.eq.s32.totalorder %s203, 0
    %s206 = sadd.s32 %s205, 1
    %s207 = scalar_select %p204, %s205, %s206
    %p210 = pneg %p204
    %p211 = scmp.eq.s32.totalorder %s17, 1
    %p212 = por %p210, %p211
    %p213 = scmp.ne.s32.totalorder %s205, %s208
    %p214 = scmp.eq.s32.totalorder %s17, 0
    %p215 = por %p213, %p214
    %p216 = scmp.ne.s32.totalorder %s205, %s208
    %p217 = scmp.eq.s32.totalorder %s22, 1
    %p218 = por %p216, %p217
    %p219 = scmp.ne.s32.totalorder %s208, %s209
    %p220 = scmp.eq.s32.totalorder %s22, 0
    %p221 = por %p219, %p220
    %p222 = scmp.ne.s32.totalorder %s208, %s209
    %p223 = scmp.eq.s32.totalorder %s23, 1
    %p224 = por %p222, %p223
    %p226 = scmp.ne.s32.totalorder %s209, %s225
    %p227 = scmp.eq.s32.totalorder %s23, 0
    %p228 = por %p226, %p227
    %s229 = ssub.s32 %s17, %s24
    %p230 = scmp.eq.s32.totalorder %s229, 0
    %s232 = sadd.s32 %s231, 1
    %s233 = scalar_select %p230, %s231, %s232
    %p236 = pneg %p230
    %p237 = scmp.eq.s32.totalorder %s17, 1
    %p238 = por %p236, %p237
    %p239 = scmp.ne.s32.totalorder %s231, %s234
    %p240 = scmp.eq.s32.totalorder %s17, 0
    %p241 = por %p239, %p240
    %p242 = scmp.ne.s32.totalorder %s231, %s234
    %p243 = scmp.eq.s32.totalorder %s22, 1
    %p244 = por %p242, %p243
    %p245 = scmp.ne.s32.totalorder %s234, %s235
    %p246 = scmp.eq.s32.totalorder %s22, 0
    %p247 = por %p245, %p246
    %p248 = scmp.ne.s32.totalorder %s234, %s235
    %p249 = scmp.eq.s32.totalorder %s23, 1
    %p250 = por %p248, %p249
    %p252 = scmp.ne.s32.totalorder %s235, %s251
    %p253 = scmp.eq.s32.totalorder %s23, 0
    %p254 = por %p252, %p253
    %s255 = ssub.s32 %s17, %s24
    %p256 = scmp.eq.s32.totalorder %s255, 0
    %s258 = sadd.s32 %s257, 1
    %s259 = scalar_select %p256, %s257, %s258
    %p262 = pneg %p256
    %p263 = scmp.eq.s32.totalorder %s17, 1
    %p264 = por %p262, %p263
    %p265 = scmp.ne.s32.totalorder %s257, %s260
    %p266 = scmp.eq.s32.totalorder %s17, 0
    %p267 = por %p265, %p266
    %p268 = scmp.ne.s32.totalorder %s257, %s260
    %p269 = scmp.eq.s32.totalorder %s22, 1
    %p270 = por %p268, %p269
    %p271 = scmp.ne.s32.totalorder %s260, %s261
    %p272 = scmp.eq.s32.totalorder %s22, 0
    %p273 = por %p271, %p272
    %p274 = scmp.ne.s32.totalorder %s260, %s261
    %p275 = scmp.eq.s32.totalorder %s23, 1
    %p276 = por %p274, %p275
    %p278 = scmp.ne.s32.totalorder %s261, %s277
    %p279 = scmp.eq.s32.totalorder %s23, 0
    %p280 = por %p278, %p279
    %p281 = scmp.le.s32.totalorder 1, %s17
    %p282 = scmp.lt.s32.totalorder %s17, 3
    %p283 = pnand %p281, %p282
    %p284 = pneg %p283
    // Predicated region
    $region9: #{_forward_impl.1} parent=5 // pred_check
      _
    $region10: #{_forward_impl.1} parent=5 // pred_check_branch
      %286 = sbr.rel (%p283) target = $region12
    $region11: #{_forward_impl.1} parent=5 // pred_region
      %s287 = ssub.s32 %s17, 1
      // Predicated region
      $region13: #{_forward_impl.1} parent=11 // pred_check
        %p288 = pneg %p90
      $region14: #{_forward_impl.1} parent=11 // pred_check_branch
        %290 = sbr.rel (%p288) target = $region16
      $region15: #{_forward_impl.1} parent=11 // pred_region
        _
      $region16: #{_forward_impl.1} parent=11 // pred_fallthru
        _
      // Predicated region
      $region17: #{_forward_impl.1} parent=11 // pred_check
        %p291 = pneg %p111
      $region18: #{_forward_impl.1} parent=11 // pred_check_branch
        %293 = sbr.rel (%p291) target = $region20
      $region19: #{_forward_impl.1} parent=11 // pred_region
        _
      $region20: #{_forward_impl.1} parent=11 // pred_fallthru
        _
      // Predicated region
      $region21: #{_forward_impl.1} parent=11 // pred_check
        %p294 = pneg %p132
      $region22: #{_forward_impl.1} parent=11 // pred_check_branch
        %296 = sbr.rel (%p294) target = $region24
      $region23: #{_forward_impl.1} parent=11 // pred_region
        _
      $region24: #{_forward_impl.1} parent=11 // pred_fallthru
        _
      // Predicated region
      $region25: #{_forward_impl.1} parent=11 // pred_check
        %p297 = pneg %p153
      $region26: #{_forward_impl.1} parent=11 // pred_check_branch
        %299 = sbr.rel (%p297) target = $region28
      $region27: #{_forward_impl.1} parent=11 // pred_region
        _
      $region28: #{_forward_impl.1} parent=11 // pred_fallthru
        _
      // Predicated region
      $region29: #{_forward_impl.1} parent=11 // pred_check
        %p300 = pneg %p174
      $region30: #{_forward_impl.1} parent=11 // pred_check_branch
        %302 = sbr.rel (%p300) target = $region32
      $region31: #{_forward_impl.1} parent=11 // pred_region
        _
      $region32: #{_forward_impl.1} parent=11 // pred_fallthru
        _
      // Predicated region
      $region33: #{_forward_impl.1} parent=11 // pred_check
        %p303 = pneg %p195
      $region34: #{_forward_impl.1} parent=11 // pred_check_branch
        %305 = sbr.rel (%p303) target = $region36
      $region35: #{_forward_impl.1} parent=11 // pred_region
        _
      $region36: #{_forward_impl.1} parent=11 // pred_fallthru
        _
    $region12: #{_forward_impl.1} parent=5 // pred_fallthru
      _
    %p306 = scmp.lt.s32.totalorder %s17, 2
    // Predicated region
    $region37: #{_forward_impl.1} parent=5 // pred_check
      %p307 = pneg %p306
    $region38: #{_forward_impl.1} parent=5 // pred_check_branch
      %309 = sbr.rel (%p307) target = $region40
    $region39: #{_forward_impl.1} parent=5 // pred_region
      // Predicated region
      $region41: #{_forward_impl.1} parent=39 // pred_check
        %p310 = pneg %p37
      $region42: #{_forward_impl.1} parent=39 // pred_check_branch
        %312 = sbr.rel (%p310) target = $region44
      $region43: #{_forward_impl.1} parent=39 // pred_region
        %s313 = smul.u32 16, %s17
        %p314 = scmp.lt.s32.totalorder %s313, 31
        %s315 = scalar_select %p314, %s313, 31
        %s316 = smul.addr %s315, 8
        %s317 = scalar_lea.vmem %s0, %s316
        %s318 = smul.u32 16, %s17
      $region44: #{_forward_impl.1} parent=39 // pred_fallthru
        _
      // Predicated region
      $region45: #{_forward_impl.1} parent=39 // pred_check
        %p319 = pneg %p63
      $region46: #{_forward_impl.1} parent=39 // pred_check_branch
        %321 = sbr.rel (%p319) target = $region48
      $region47: #{_forward_impl.1} parent=39 // pred_region
        %s322 = smul.u32 16, %s17
        %p323 = scmp.lt.s32.totalorder %s322, 31
        %s324 = scalar_select %p323, %s322, 31
        %s325 = smul.addr %s324, 8
        %s326 = scalar_lea.vmem %s1, %s325
        %s327 = smul.u32 16, %s17
      $region48: #{_forward_impl.1} parent=39 // pred_fallthru
        _
    $region40: #{_forward_impl.1} parent=5 // pred_fallthru
      _
    %p328 = scmp.le.s32.totalorder 1, %s17
    %p329 = scmp.lt.s32.totalorder %s17, 3
    %p330 = pnand %p328, %p329
    %p331 = pneg %p330
    // Predicated region
    $region49: #{_forward_impl.1} parent=5 // pred_check
      _
    $region50: #{_forward_impl.1} parent=5 // pred_check_branch
      %333 = sbr.rel (%p330) target = $region52
    $region51: #{_forward_impl.1} parent=5 // pred_region
      %s334 = ssub.s32 %s17, 1
      %s335 = smul.u32 16, %s22
      %p336 = scmp.lt.s32.totalorder %s335, 31
      %s337 = scalar_select %p336, %s335, 31
      %s338 = smul.addr %s337, 8
      %s339 = scalar_lea.vmem %s0, %s338
      %p340 = pneg %p43
      %p341 = pneg %p40
      %s342 = smul.u32 16, %s22
      %p343 = scmp.lt.s32.totalorder %s342, 31
      %s344 = scalar_select %p343, %s342, 31
      %s345 = smul.addr %s344, 8
      %s346 = scalar_lea.vmem %s1, %s345
      %p347 = pneg %p69
      %p348 = pneg %p66
      %p349 = pneg %p90
      %p350 = pneg %p87
      %p351 = pneg %p111
      %p352 = pneg %p108
      %p353 = pneg %p132
      %p354 = pneg %p129
      %p355 = pneg %p153
      %p356 = pneg %p150
      %p357 = pneg %p174
      %p358 = pneg %p171
      %p359 = pneg %p195
      %p360 = pneg %p192
      %p361 = pneg %p221
      %p362 = pneg %p218
      %s363 = smul.u32 16, %s22
      %p364 = scmp.lt.s32.totalorder %s363, 31
      %s365 = scalar_select %p364, %s363, 31
      %s366 = smul.addr %s365, 8
      %s367 = scalar_lea.vmem %s8, %s366
      %p368 = pneg %p247
      %p369 = pneg %p244
      %s370 = smul.u32 16, %s22
      %p371 = scmp.lt.s32.totalorder %s370, 31
      %s372 = scalar_select %p371, %s370, 31
      %s373 = smul.addr %s372, 8
      %s374 = scalar_lea.vmem %s9, %s373
      %p375 = pneg %p273
      %p376 = pneg %p270
      %p377 = scmp.lt.s32.totalorder %s22, 1
      %s378 = scalar_select %p377, %s22, 1
      %s379 = smul.addr %s378, 8
      %s380 = scalar_lea.vmem %s10, %s379
      %s381 = smul.u32 16, %s22
      %p382 = scmp.lt.s32.totalorder %s381, 31
      %s383 = scalar_select %p382, %s381, 31
      %s384 = smul.addr %s383, 8
      %s385 = scalar_lea.vmem %s0, %s384
      %s386 = smul.u32 16, %s22
      %s387 = smul.u32 16, %s22
      %p388 = scmp.lt.s32.totalorder %s387, 31
      %s389 = scalar_select %p388, %s387, 31
      %s390 = smul.addr %s389, 8
      %s391 = scalar_lea.vmem %s1, %s390
      %s392 = smul.u32 16, %s22
      %s393 = smul.u32 16, %s22
      %p394 = scmp.lt.s32.totalorder %s393, 31
      %s395 = scalar_select %p394, %s393, 31
      %s396 = smul.addr %s395, 8
      %s397 = scalar_lea.vmem %s8, %s396
      %s398 = smul.u32 16, %s22
      %s399 = smul.u32 16, %s22
      %p400 = scmp.lt.s32.totalorder %s399, 31
      %s401 = scalar_select %p400, %s399, 31
      %s402 = smul.addr %s401, 8
      %s403 = scalar_lea.vmem %s9, %s402
      %s404 = smul.u32 16, %s22
      %p405 = scmp.lt.s32.totalorder %s22, 1
      %s406 = scalar_select %p405, %s22, 1
      %s407 = smul.addr %s406, 8
      %s408 = scalar_lea.vmem %s10, %s407
      %v409 = vld [vmem:[%s385] sm:$0xff]
      %v410 = vld [vmem:[%s385 + $0x8] sm:$0xff]
      %v411 = vld [vmem:[%s385 + $0x10] sm:$0xff]
      %v412 = vld [vmem:[%s385 + $0x18] sm:$0xff]
      %v413 = vld [vmem:[%s385 + $0x20] sm:$0xff]
      %v414 = vld [vmem:[%s385 + $0x28] sm:$0xff]
      %v415 = vld [vmem:[%s385 + $0x30] sm:$0xff]
      %v416 = vld [vmem:[%s385 + $0x38] sm:$0xff]
      %v417 = vld [vmem:[%s385 + $0x40] sm:$0xff]
      %v418 = vld [vmem:[%s385 + $0x48] sm:$0xff]
      %v419 = vld [vmem:[%s385 + $0x50] sm:$0xff]
      %v420 = vld [vmem:[%s385 + $0x58] sm:$0xff]
      %v421 = vld [vmem:[%s385 + $0x60] sm:$0xff]
      %v422 = vld [vmem:[%s385 + $0x68] sm:$0xff]
      %v423 = vld [vmem:[%s385 + $0x70] sm:$0xff]
      %v424 = vld [vmem:[%s385 + $0x78] sm:$0xff]
      %v425 = vld [vmem:[%s2] sm:$0xff]
      %v426 = vld [vmem:[%s2 + $0x8] sm:$0xff]
      %v427 = vld [vmem:[%s2 + $0x10] sm:$0xff]
      %v428 = vld [vmem:[%s2 + $0x18] sm:$0xff]
      %v429 = vld [vmem:[%s3] sm:$0x1]
      %v431 = vlaneseq
      %v432 = vshrl.u32 %v431, 7
      %v433 = vsub.s32 0, %v432
      %v434 = vrot.slane %v429, %v433
      %vm436 = vcmask 261120
      %v438 = vsel %vm436, %v409, 0
      %v441 = vsel %vm436, %v410, 0
      %v444 = vsel %vm436, %v411, 0
      %v447 = vsel %vm436, %v412, 0
      %v450 = vsel %vm436, %v413, 0
      %v453 = vsel %vm436, %v414, 0
      %v456 = vsel %vm436, %v415, 0
      %v459 = vsel %vm436, %v416, 0
      %v462 = vsel %vm436, %v417, 0
      %v465 = vsel %vm436, %v418, 0
      %v468 = vsel %vm436, %v419, 0
      %v471 = vsel %vm436, %v420, 0
      %v474 = vsel %vm436, %v421, 0
      %v477 = vsel %vm436, %v422, 0
      %v480 = vsel %vm436, %v423, 0
      %v483 = vsel %vm436, %v424, 0
      %485 = vmatprep.subr.mxu0 0.0
      %486 = vmatpush1.msra.mxu0 %v425
      %487 = vmatprep.subr.mxu0 0.0
      %488 = vmatpush1.msra.mxu0 %v426
      %489 = vmatprep.subr.mxu0 0.0
      %490 = vmatpush1.msra.mxu0 %v427
      %491 = vmatprep.subr.mxu0 0.0
      %492 = vmatpush1.msra.mxu0 %v428
      %493 = vmatprep.subr.mxu0 0.0
      %494 = vmatpush1.msra.mxu0 0.0
      %495 = vmatprep.subr.mxu0 0.0
      %496 = vmatpush1.msra.mxu0 0.0
      %497 = vmatprep.subr.mxu0 0.0
      %498 = vmatpush1.msra.mxu0 0.0
      %499 = vmatprep.subr.mxu0 0.0
      %500 = vmatpush1.msra.mxu0 0.0
      %501 = vmatprep.subr.mxu0 0.0
      %502 = vmatpush1.msra.mxu0 0.0
      %503 = vmatprep.subr.mxu0 0.0
      %504 = vmatpush1.msra.mxu0 0.0
      %505 = vmatprep.subr.mxu0 0.0
      %506 = vmatpush1.msra.mxu0 0.0
      %507 = vmatprep.subr.mxu0 0.0
      %508 = vmatpush1.msra.mxu0 0.0
      %509 = vmatprep.subr.mxu0 0.0
      %510 = vmatpush1.msra.mxu0 0.0
      %511 = vmatprep.subr.mxu0 0.0
      %512 = vmatpush1.msra.mxu0 0.0
      %513 = vmatprep.subr.mxu0 0.0
      %514 = vmatpush1.msra.mxu0 0.0
      %515 = vmatprep.subr.mxu0 0.0
      %516 = vmatpush1.msra.mxu0 0.0
      %517 = vmatprep.subr.mxu0 0.0
      %518 = vmatpush1.msra.mxu0 0.0
      %519 = vmatprep.subr.mxu0 0.0
      %520 = vmatpush1.msra.mxu0 0.0
      %521 = vmatprep.subr.mxu0 0.0
      %522 = vmatpush1.msra.mxu0 0.0
      %523 = vmatprep.subr.mxu0 0.0
      %524 = vmatpush1.msra.mxu0 0.0
      %525 = vmatprep.subr.mxu0 0.0
      %526 = vmatpush1.msra.mxu0 0.0
      %527 = vmatprep.subr.mxu0 0.0
      %528 = vmatpush1.msra.mxu0 0.0
      %529 = vmatprep.subr.mxu0 0.0
      %530 = vmatpush1.msra.mxu0 0.0
      %531 = vmatprep.subr.mxu0 0.0
      %532 = vmatpush1.msra.mxu0 0.0
      %533 = vmatprep.subr.mxu0 0.0
      %534 = vmatpush1.msra.mxu0 0.0
      %535 = vmatprep.subr.mxu0 0.0
      %536 = vmatpush1.msra.mxu0 0.0
      %537 = vmatprep.subr.mxu0 0.0
      %538 = vmatpush1.msra.mxu0 0.0
      %539 = vmatprep.subr.mxu0 0.0
      %540 = vmatpush1.msra.mxu0 0.0
      %541 = vmatprep.subr.mxu0 0.0
      %542 = vmatpush1.msra.mxu0 0.0
      %543 = vmatprep.subr.mxu0 0.0
      %544 = vmatpush1.msra.mxu0 0.0
      %545 = vmatprep.subr.mxu0 0.0
      %546 = vmatpush1.msra.mxu0 0.0
      %547 = vmatprep.subr.mxu0 0.0
      %548 = vmatpush1.msra.mxu0 0.0
      %549 = vmatprep.mubr.f32.mxu0 0.0
      %550 = vmatmul.mubr.f32.gmra.mrb[0].mxu0 %v438
      %v551 = vpop.f32.mrb[0].mxu0
      %v552 = vadd.f32 %v434, %v551
      %v553 = vpop.f32.mrb[0].mxu0
      %554 = vmatprep.mubr.f32.mxu0 0.0
      %555 = vmatmul.mubr.f32.gmra.mrb[0].mxu0 %v441
      %v556 = vpop.f32.mrb[0].mxu0
      %v557 = vadd.f32 %v434, %v556
      %v558 = vpop.f32.mrb[0].mxu0
      %559 = vmatprep.mubr.f32.mxu0 0.0
      %560 = vmatmul.mubr.f32.gmra.mrb[0].mxu0 %v444
      %v561 = vpop.f32.mrb[0].mxu0
      %v562 = vadd.f32 %v434, %v561
      %v563 = vpop.f32.mrb[0].mxu0
      %564 = vmatprep.mubr.f32.mxu0 0.0
      %565 = vmatmul.mubr.f32.gmra.mrb[0].mxu0 %v447
      %v566 = vpop.f32.mrb[0].mxu0
      %v567 = vadd.f32 %v434, %v566
      %v568 = vpop.f32.mrb[0].mxu0
      %569 = vmatprep.mubr.f32.mxu0 0.0
      %570 = vmatmul.mubr.f32.gmra.mrb[0].mxu0 %v450
      %v571 = vpop.f32.mrb[0].mxu0
      %v572 = vadd.f32 %v434, %v571
      %v573 = vpop.f32.mrb[0].mxu0
      %574 = vmatprep.mubr.f32.mxu0 0.0
      %575 = vmatmul.mubr.f32.gmra.mrb[0].mxu0 %v453
      %v576 = vpop.f32.mrb[0].mxu0
      %v577 = vadd.f32 %v434, %v576
      %v578 = vpop.f32.mrb[0].mxu0
      %579 = vmatprep.mubr.f32.mxu0 0.0
      %580 = vmatmul.mubr.f32.gmra.mrb[0].mxu0 %v456
      %v581 = vpop.f32.mrb[0].mxu0
      %v582 = vadd.f32 %v434, %v581
      %v583 = vpop.f32.mrb[0].mxu0
      %584 = vmatprep.mubr.f32.mxu0 0.0
      %585 = vmatmul.mubr.f32.gmra.mrb[0].mxu0 %v459
      %v586 = vpop.f32.mrb[0].mxu0
      %v587 = vadd.f32 %v434, %v586
      %v588 = vpop.f32.mrb[0].mxu0
      %589 = vmatprep.mubr.f32.mxu0 0.0
      %590 = vmatmul.mubr.f32.gmra.mrb[0].mxu0 %v462
      %v591 = vpop.f32.mrb[0].mxu0
      %v592 = vadd.f32 %v434, %v591
      %v593 = vpop.f32.mrb[0].mxu0
      %594 = vmatprep.mubr.f32.mxu0 0.0
      %595 = vmatmul.mubr.f32.gmra.mrb[0].mxu0 %v465
      %v596 = vpop.f32.mrb[0].mxu0
      %v597 = vadd.f32 %v434, %v596
      %v598 = vpop.f32.mrb[0].mxu0
      %599 = vmatprep.mubr.f32.mxu0 0.0
      %600 = vmatmul.mubr.f32.gmra.mrb[0].mxu0 %v468
      %v601 = vpop.f32.mrb[0].mxu0
      %v602 = vadd.f32 %v434, %v601
      %v603 = vpop.f32.mrb[0].mxu0
      %604 = vmatprep.mubr.f32.mxu0 0.0
      %605 = vmatmul.mubr.f32.gmra.mrb[0].mxu0 %v471
      %v606 = vpop.f32.mrb[0].mxu0
      %v607 = vadd.f32 %v434, %v606
      %v608 = vpop.f32.mrb[0].mxu0
      %609 = vmatprep.mubr.f32.mxu0 0.0
      %610 = vmatmul.mubr.f32.gmra.mrb[0].mxu0 %v474
      %v611 = vpop.f32.mrb[0].mxu0
      %v612 = vadd.f32 %v434, %v611
      %v613 = vpop.f32.mrb[0].mxu0
      %614 = vmatprep.mubr.f32.mxu0 0.0
      %615 = vmatmul.mubr.f32.gmra.mrb[0].mxu0 %v477
      %v616 = vpop.f32.mrb[0].mxu0
      %v617 = vadd.f32 %v434, %v616
      %v618 = vpop.f32.mrb[0].mxu0
      %619 = vmatprep.mubr.f32.mxu0 0.0
      %620 = vmatmul.mubr.f32.gmra.mrb[0].mxu0 %v480
      %v621 = vpop.f32.mrb[0].mxu0
      %v622 = vadd.f32 %v434, %v621
      %v623 = vpop.f32.mrb[0].mxu0
      %624 = vmatprep.mubr.f32.mxu0 0.0
      %625 = vmatmul.mubr.f32.gmra.mrb[0].mxu0 %v483
      %v626 = vpop.f32.mrb[0].mxu0
      %v627 = vadd.f32 %v434, %v626
      %v628 = vpop.f32.mrb[0].mxu0
      %629 = vdwg.mxu0
      %v630 = vmax.f32 %v552, 0.0
      %v631 = vmax.f32 %v557, 0.0
      %v632 = vmax.f32 %v562, 0.0
      %v633 = vmax.f32 %v567, 0.0
      %v634 = vmax.f32 %v572, 0.0
      %v635 = vmax.f32 %v577, 0.0
      %v636 = vmax.f32 %v582, 0.0
      %v637 = vmax.f32 %v587, 0.0
      %v638 = vmax.f32 %v592, 0.0
      %v639 = vmax.f32 %v597, 0.0
      %v640 = vmax.f32 %v602, 0.0
      %v641 = vmax.f32 %v607, 0.0
      %v642 = vmax.f32 %v612, 0.0
      %v643 = vmax.f32 %v617, 0.0
      %v644 = vmax.f32 %v622, 0.0
      %v645 = vmax.f32 %v627, 0.0
      %v646 = vld [vmem:[%s4] sm:$0xff]
      %v647 = vld [vmem:[%s4 + $0x8] sm:$0xff]
      %v648 = vld [vmem:[%s4 + $0x10] sm:$0xff]
      %v649 = vld [vmem:[%s4 + $0x18] sm:$0xff]
      %v650 = vld [vmem:[%s4 + $0x20] sm:$0xff]
      %v651 = vld [vmem:[%s4 + $0x28] sm:$0xff]
      %v652 = vld [vmem:[%s4 + $0x30] sm:$0xff]
      %v653 = vld [vmem:[%s4 + $0x38] sm:$0xff]
      %v654 = vld [vmem:[%s5] sm:$0x1]
      %v656 = vlaneseq
      %v657 = vshrl.u32 %v656, 7
      %v658 = vsub.s32 0, %v657
      %v659 = vrot.slane %v654, %v658
      %vm661 = vcmask 523264
      %v663 = vsel %vm661, %v630, 0
      %v666 = vsel %vm661, %v631, 0
      %v669 = vsel %vm661, %v632, 0
      %v672 = vsel %vm661, %v633, 0
      %v675 = vsel %vm661, %v634, 0
      %v678 = vsel %vm661, %v635, 0
      %v681 = vsel %vm661, %v636, 0
      %v684 = vsel %vm661, %v637, 0
      %v687 = vsel %vm661, %v638, 0
      %v690 = vsel %vm661, %v639, 0
      %v693 = vsel %vm661, %v640, 0
      %v696 = vsel %vm661, %v641, 0
      %v699 = vsel %vm661, %v642, 0
      %v702 = vsel %vm661, %v643, 0
      %v705 = vsel %vm661, %v644, 0
      %v708 = vsel %vm661, %v645, 0
      %710 = vmatprep.subr.mxu0 0.0
      %711 = vmatpush1.msra.mxu0 %v646
      %712 = vmatprep.subr.mxu0 0.0
      %713 = vmatpush1.msra.mxu0 %v647
      %714 = vmatprep.subr.mxu0 0.0
      %715 = vmatpush1.msra.mxu0 %v648
      %716 = vmatprep.subr.mxu0 0.0
      %717 = vmatpush1.msra.mxu0 %v649
      %718 = vmatprep.subr.mxu0 0.0
      %719 = vmatpush1.msra.mxu0 %v650
      %720 = vmatprep.subr.mxu0 0.0
      %721 = vmatpush1.msra.mxu0 %v651
      %722 = vmatprep.subr.mxu0 0.0
      %723 = vmatpush1.msra.mxu0 %v652
      %724 = vmatprep.subr.mxu0 0.0
      %725 = vmatpush1.msra.mxu0 %v653
      %726 = vmatprep.subr.mxu0 0.0
      %727 = vmatpush1.msra.mxu0 0.0
      %728 = vmatprep.subr.mxu0 0.0
      %729 = vmatpush1.msra.mxu0 0.0
      %730 = vmatprep.subr.mxu0 0.0
      %731 = vmatpush1.msra.mxu0 0.0
      %732 = vmatprep.subr.mxu0 0.0
      %733 = vmatpush1.msra.mxu0 0.0
      %734 = vmatprep.subr.mxu0 0.0
      %735 = vmatpush1.msra.mxu0 0.0
      %736 = vmatprep.subr.mxu0 0.0
      %737 = vmatpush1.msra.mxu0 0.0
      %738 = vmatprep.subr.mxu0 0.0
      %739 = vmatpush1.msra.mxu0 0.0
      %740 = vmatprep.subr.mxu0 0.0
      %741 = vmatpush1.msra.mxu0 0.0
      %742 = vmatprep.subr.mxu0 0.0
      %743 = vmatpush1.msra.mxu0 0.0
      %744 = vmatprep.subr.mxu0 0.0
      %745 = vmatpush1.msra.mxu0 0.0
      %746 = vmatprep.subr.mxu0 0.0
      %747 = vmatpush1.msra.mxu0 0.0
      %748 = vmatprep.subr.mxu0 0.0
      %749 = vmatpush1.msra.mxu0 0.0
      %750 = vmatprep.subr.mxu0 0.0
      %751 = vmatpush1.msra.mxu0 0.0
      %752 = vmatprep.subr.mxu0 0.0
      %753 = vmatpush1.msra.mxu0 0.0
      %754 = vmatprep.subr.mxu0 0.0
      %755 = vmatpush1.msra.mxu0 0.0
      %756 = vmatprep.subr.mxu0 0.0
      %757 = vmatpush1.msra.mxu0 0.0
      %758 = vmatprep.subr.mxu0 0.0
      %759 = vmatpush1.msra.mxu0 0.0
      %760 = vmatprep.subr.mxu0 0.0
      %761 = vmatpush1.msra.mxu0 0.0
      %762 = vmatprep.subr.mxu0 0.0
      %763 = vmatpush1.msra.mxu0 0.0
      %764 = vmatprep.subr.mxu0 0.0
      %765 = vmatpush1.msra.mxu0 0.0
      %766 = vmatprep.subr.mxu0 0.0
      %767 = vmatpush1.msra.mxu0 0.0
      %768 = vmatprep.subr.mxu0 0.0
      %769 = vmatpush1.msra.mxu0 0.0
      %770 = vmatprep.subr.mxu0 0.0
      %771 = vmatpush1.msra.mxu0 0.0
      %772 = vmatprep.subr.mxu0 0.0
      %773 = vmatpush1.msra.mxu0 0.0
      %774 = vmatprep.mubr.f32.mxu0 0.0
      %775 = vmatmul.mubr.f32.gmra.mrb[0].mxu0 %v663
      %v776 = vpop.f32.mrb[0].mxu0
      %v777 = vadd.f32 %v659, %v776
      %v778 = vpop.f32.mrb[0].mxu0
      %779 = vmatprep.mubr.f32.mxu0 0.0
      %780 = vmatmul.mubr.f32.gmra.mrb[0].mxu0 %v666
      %v781 = vpop.f32.mrb[0].mxu0
      %v782 = vadd.f32 %v659, %v781
      %v783 = vpop.f32.mrb[0].mxu0
      %784 = vmatprep.mubr.f32.mxu0 0.0
      %785 = vmatmul.mubr.f32.gmra.mrb[0].mxu0 %v669
      %v786 = vpop.f32.mrb[0].mxu0
      %v787 = vadd.f32 %v659, %v786
      %v788 = vpop.f32.mrb[0].mxu0
      %789 = vmatprep.mubr.f32.mxu0 0.0
      %790 = vmatmul.mubr.f32.gmra.mrb[0].mxu0 %v672
      %v791 = vpop.f32.mrb[0].mxu0
      %v792 = vadd.f32 %v659, %v791
      %v793 = vpop.f32.mrb[0].mxu0
      %794 = vmatprep.mubr.f32.mxu0 0.0
      %795 = vmatmul.mubr.f32.gmra.mrb[0].mxu0 %v675
      %v796 = vpop.f32.mrb[0].mxu0
      %v797 = vadd.f32 %v659, %v796
      %v798 = vpop.f32.mrb[0].mxu0
      %799 = vmatprep.mubr.f32.mxu0 0.0
      %800 = vmatmul.mubr.f32.gmra.mrb[0].mxu0 %v678
      %v801 = vpop.f32.mrb[0].mxu0
      %v802 = vadd.f32 %v659, %v801
      %v803 = vpop.f32.mrb[0].mxu0
      %804 = vmatprep.mubr.f32.mxu0 0.0
      %805 = vmatmul.mubr.f32.gmra.mrb[0].mxu0 %v681
      %v806 = vpop.f32.mrb[0].mxu0
      %v807 = vadd.f32 %v659, %v806
      %v808 = vpop.f32.mrb[0].mxu0
      %809 = vmatprep.mubr.f32.mxu0 0.0
      %810 = vmatmul.mubr.f32.gmra.mrb[0].mxu0 %v684
      %v811 = vpop.f32.mrb[0].mxu0
      %v812 = vadd.f32 %v659, %v811
      %v813 = vpop.f32.mrb[0].mxu0
      %814 = vmatprep.mubr.f32.mxu0 0.0
      %815 = vmatmul.mubr.f32.gmra.mrb[0].mxu0 %v687
      %v816 = vpop.f32.mrb[0].mxu0
      %v817 = vadd.f32 %v659, %v816
      %v818 = vpop.f32.mrb[0].mxu0
      %819 = vmatprep.mubr.f32.mxu0 0.0
      %820 = vmatmul.mubr.f32.gmra.mrb[0].mxu0 %v690
      %v821 = vpop.f32.mrb[0].mxu0
      %v822 = vadd.f32 %v659, %v821
      %v823 = vpop.f32.mrb[0].mxu0
      %824 = vmatprep.mubr.f32.mxu0 0.0
      %825 = vmatmul.mubr.f32.gmra.mrb[0].mxu0 %v693
      %v826 = vpop.f32.mrb[0].mxu0
      %v827 = vadd.f32 %v659, %v826
      %v828 = vpop.f32.mrb[0].mxu0
      %829 = vmatprep.mubr.f32.mxu0 0.0
      %830 = vmatmul.mubr.f32.gmra.mrb[0].mxu0 %v696
      %v831 = vpop.f32.mrb[0].mxu0
      %v832 = vadd.f32 %v659, %v831
      %v833 = vpop.f32.mrb[0].mxu0
      %834 = vmatprep.mubr.f32.mxu0 0.0
      %835 = vmatmul.mubr.f32.gmra.mrb[0].mxu0 %v699
      %v836 = vpop.f32.mrb[0].mxu0
      %v837 = vadd.f32 %v659, %v836
      %v838 = vpop.f32.mrb[0].mxu0
      %839 = vmatprep.mubr.f32.mxu0 0.0
      %840 = vmatmul.mubr.f32.gmra.mrb[0].mxu0 %v702
      %v841 = vpop.f32.mrb[0].mxu0
      %v842 = vadd.f32 %v659, %v841
      %v843 = vpop.f32.mrb[0].mxu0
      %844 = vmatprep.mubr.f32.mxu0 0.0
      %845 = vmatmul.mubr.f32.gmra.mrb[0].mxu0 %v705
      %v846 = vpop.f32.mrb[0].mxu0
      %v847 = vadd.f32 %v659, %v846
      %v848 = vpop.f32.mrb[0].mxu0
      %849 = vmatprep.mubr.f32.mxu0 0.0
      %850 = vmatmul.mubr.f32.gmra.mrb[0].mxu0 %v708
      %v851 = vpop.f32.mrb[0].mxu0
      %v852 = vadd.f32 %v659, %v851
      %v853 = vpop.f32.mrb[0].mxu0
      %854 = vdwg.mxu0
      %v855 = vxor.u32 %v777, 2147483648
      %v856 = vxor.u32 %v782, 2147483648
      %v857 = vxor.u32 %v787, 2147483648
      %v858 = vxor.u32 %v792, 2147483648
      %v859 = vxor.u32 %v797, 2147483648
      %v860 = vxor.u32 %v802, 2147483648
      %v861 = vxor.u32 %v807, 2147483648
      %v862 = vxor.u32 %v812, 2147483648
      %v863 = vxor.u32 %v817, 2147483648
      %v864 = vxor.u32 %v822, 2147483648
      %v865 = vxor.u32 %v827, 2147483648
      %v866 = vxor.u32 %v832, 2147483648
      %v867 = vxor.u32 %v837, 2147483648
      %v868 = vxor.u32 %v842, 2147483648
      %v869 = vxor.u32 %v847, 2147483648
      %v870 = vxor.u32 %v852, 2147483648
      %v871 = vmul.f32 %v855, 1.442695
      %v872 = vpow.pop %v871
      %v873 = vmul.f32 %v856, 1.442695
      %v874 = vpow.pop %v873
      %v875 = vmul.f32 %v857, 1.442695
      %v876 = vpow.pop %v875
      %v877 = vmul.f32 %v858, 1.442695
      %v878 = vpow.pop %v877
      %v879 = vmul.f32 %v859, 1.442695
      %v880 = vpow.pop %v879
      %v881 = vmul.f32 %v860, 1.442695
      %v882 = vpow.pop %v881
      %v883 = vmul.f32 %v861, 1.442695
      %v884 = vpow.pop %v883
      %v885 = vmul.f32 %v862, 1.442695
      %v886 = vpow.pop %v885
      %v887 = vmul.f32 %v863, 1.442695
      %v888 = vpow.pop %v887
      %v889 = vmul.f32 %v864, 1.442695
      %v890 = vpow.pop %v889
      %v891 = vmul.f32 %v865, 1.442695
      %v892 = vpow.pop %v891
      %v893 = vmul.f32 %v866, 1.442695
      %v894 = vpow.pop %v893
      %v895 = vmul.f32 %v867, 1.442695
      %v896 = vpow.pop %v895
      %v897 = vmul.f32 %v868, 1.442695
      %v898 = vpow.pop %v897
      %v899 = vmul.f32 %v869, 1.442695
      %v900 = vpow.pop %v899
      %v901 = vmul.f32 %v870, 1.442695
      %v902 = vpow.pop %v901
      %v903 = vadd.f32 %v872, 1.0
      %v904 = vadd.f32 %v874, 1.0
      %v905 = vadd.f32 %v876, 1.0
      %v906 = vadd.f32 %v878, 1.0
      %v907 = vadd.f32 %v880, 1.0
      %v908 = vadd.f32 %v882, 1.0
      %v909 = vadd.f32 %v884, 1.0
      %v910 = vadd.f32 %v886, 1.0
      %v911 = vadd.f32 %v888, 1.0
      %v912 = vadd.f32 %v890, 1.0
      %v913 = vadd.f32 %v892, 1.0
      %v914 = vadd.f32 %v894, 1.0
      %v915 = vadd.f32 %v896, 1.0
      %v916 = vadd.f32 %v898, 1.0
      %v917 = vadd.f32 %v900, 1.0
      %v918 = vadd.f32 %v902, 1.0
      %v919 = vrcp.pop %v903
      %v920 = vmul.f32 1.0, %v919
      %v921 = vrcp.pop %v904
      %v922 = vmul.f32 1.0, %v921
      %v923 = vrcp.pop %v905
      %v924 = vmul.f32 1.0, %v923
      %v925 = vrcp.pop %v906
      %v926 = vmul.f32 1.0, %v925
      %v927 = vrcp.pop %v907
      %v928 = vmul.f32 1.0, %v927
      %v929 = vrcp.pop %v908
      %v930 = vmul.f32 1.0, %v929
      %v931 = vrcp.pop %v909
      %v932 = vmul.f32 1.0, %v931
      %v933 = vrcp.pop %v910
      %v934 = vmul.f32 1.0, %v933
      %v935 = vrcp.pop %v911
      %v936 = vmul.f32 1.0, %v935
      %v937 = vrcp.pop %v912
      %v938 = vmul.f32 1.0, %v937
      %v939 = vrcp.pop %v913
      %v940 = vmul.f32 1.0, %v939
      %v941 = vrcp.pop %v914
      %v942 = vmul.f32 1.0, %v941
      %v943 = vrcp.pop %v915
      %v944 = vmul.f32 1.0, %v943
      %v945 = vrcp.pop %v916
      %v946 = vmul.f32 1.0, %v945
      %v947 = vrcp.pop %v917
      %v948 = vmul.f32 1.0, %v947
      %v949 = vrcp.pop %v918
      %v950 = vmul.f32 1.0, %v949
      %v951 = vld [vmem:[%s6] sm:$0xff]
      %v952 = vld [vmem:[%s6 + $0x8] sm:$0xff]
      %v953 = vld [vmem:[%s6 + $0x10] sm:$0xff]
      %v954 = vld [vmem:[%s6 + $0x18] sm:$0xff]
      %v955 = vld [vmem:[%s6 + $0x20] sm:$0xff]
      %v956 = vld [vmem:[%s6 + $0x28] sm:$0xff]
      %v957 = vld [vmem:[%s6 + $0x30] sm:$0xff]
      %v958 = vld [vmem:[%s6 + $0x38] sm:$0xff]
      %v959 = vld [vmem:[%s7] sm:$0x1]
      %v961 = vlaneseq
      %v962 = vshrl.u32 %v961, 7
      %v963 = vsub.s32 0, %v962
      %v964 = vrot.slane %v959, %v963
      %966 = vmatprep.subr.mxu0 0.0
      %967 = vmatpush1.msra.mxu0 %v951
      %968 = vmatprep.subr.mxu0 0.0
      %969 = vmatpush1.msra.mxu0 %v952
      %970 = vmatprep.subr.mxu0 0.0
      %971 = vmatpush1.msra.mxu0 %v953
      %972 = vmatprep.subr.mxu0 0.0
      %973 = vmatpush1.msra.mxu0 %v954
      %974 = vmatprep.subr.mxu0 0.0
      %975 = vmatpush1.msra.mxu0 %v955
      %976 = vmatprep.subr.mxu0 0.0
      %977 = vmatpush1.msra.mxu0 %v956
      %978 = vmatprep.subr.mxu0 0.0
      %979 = vmatpush1.msra.mxu0 %v957
      %980 = vmatprep.subr.mxu0 0.0
      %981 = vmatpush1.msra.mxu0 %v958
      %982 = vmatprep.subr.mxu0 0.0
      %983 = vmatpush1.msra.mxu0 0.0
      %984 = vmatprep.subr.mxu0 0.0
      %985 = vmatpush1.msra.mxu0 0.0
      %986 = vmatprep.subr.mxu0 0.0
      %987 = vmatpush1.msra.mxu0 0.0
      %988 = vmatprep.subr.mxu0 0.0
      %989 = vmatpush1.msra.mxu0 0.0
      %990 = vmatprep.subr.mxu0 0.0
      %991 = vmatpush1.msra.mxu0 0.0
      %992 = vmatprep.subr.mxu0 0.0
      %993 = vmatpush1.msra.mxu0 0.0
      %994 = vmatprep.subr.mxu0 0.0
      %995 = vmatpush1.msra.mxu0 0.0
      %996 = vmatprep.subr.mxu0 0.0
      %997 = vmatpush1.msra.mxu0 0.0
      %998 = vmatprep.subr.mxu0 0.0
      %999 = vmatpush1.msra.mxu0 0.0
      %1000 = vmatprep.subr.mxu0 0.0
      %1001 = vmatpush1.msra.mxu0 0.0
      %1002 = vmatprep.subr.mxu0 0.0
      %1003 = vmatpush1.msra.mxu0 0.0
      %1004 = vmatprep.subr.mxu0 0.0
      %1005 = vmatpush1.msra.mxu0 0.0
      %1006 = vmatprep.subr.mxu0 0.0
      %1007 = vmatpush1.msra.mxu0 0.0
      %1008 = vmatprep.subr.mxu0 0.0
      %1009 = vmatpush1.msra.mxu0 0.0
      %1010 = vmatprep.subr.mxu0 0.0
      %1011 = vmatpush1.msra.mxu0 0.0
      %1012 = vmatprep.subr.mxu0 0.0
      %1013 = vmatpush1.msra.mxu0 0.0
      %1014 = vmatprep.subr.mxu0 0.0
      %1015 = vmatpush1.msra.mxu0 0.0
      %1016 = vmatprep.subr.mxu0 0.0
      %1017 = vmatpush1.msra.mxu0 0.0
      %1018 = vmatprep.subr.mxu0 0.0
      %1019 = vmatpush1.msra.mxu0 0.0
      %1020 = vmatprep.subr.mxu0 0.0
      %1021 = vmatpush1.msra.mxu0 0.0
      %1022 = vmatprep.subr.mxu0 0.0
      %1023 = vmatpush1.msra.mxu0 0.0
      %1024 = vmatprep.subr.mxu0 0.0
      %1025 = vmatpush1.msra.mxu0 0.0
      %1026 = vmatprep.subr.mxu0 0.0
      %1027 = vmatpush1.msra.mxu0 0.0
      %1028 = vmatprep.subr.mxu0 0.0
      %1029 = vmatpush1.msra.mxu0 0.0
      %1030 = vmatprep.mubr.f32.mxu0 0.0
      %1031 = vmatmul.mubr.f32.gmra.mrb[0].mxu0 %v663
      %v1032 = vpop.f32.mrb[0].mxu0
      %v1033 = vadd.f32 %v964, %v1032
      %v1034 = vpop.f32.mrb[0].mxu0
      %1035 = vmatprep.mubr.f32.mxu0 0.0
      %1036 = vmatmul.mubr.f32.gmra.mrb[0].mxu0 %v666
      %v1037 = vpop.f32.mrb[0].mxu0
      %v1038 = vadd.f32 %v964, %v1037
      %v1039 = vpop.f32.mrb[0].mxu0
      %1040 = vmatprep.mubr.f32.mxu0 0.0
      %1041 = vmatmul.mubr.f32.gmra.mrb[0].mxu0 %v669
      %v1042 = vpop.f32.mrb[0].mxu0
      %v1043 = vadd.f32 %v964, %v1042
      %v1044 = vpop.f32.mrb[0].mxu0
      %1045 = vmatprep.mubr.f32.mxu0 0.0
      %1046 = vmatmul.mubr.f32.gmra.mrb[0].mxu0 %v672
      %v1047 = vpop.f32.mrb[0].mxu0
      %v1048 = vadd.f32 %v964, %v1047
      %v1049 = vpop.f32.mrb[0].mxu0
      %1050 = vmatprep.mubr.f32.mxu0 0.0
      %1051 = vmatmul.mubr.f32.gmra.mrb[0].mxu0 %v675
      %v1052 = vpop.f32.mrb[0].mxu0
      %v1053 = vadd.f32 %v964, %v1052
      %v1054 = vpop.f32.mrb[0].mxu0
      %1055 = vmatprep.mubr.f32.mxu0 0.0
      %1056 = vmatmul.mubr.f32.gmra.mrb[0].mxu0 %v678
      %v1057 = vpop.f32.mrb[0].mxu0
      %v1058 = vadd.f32 %v964, %v1057
      %v1059 = vpop.f32.mrb[0].mxu0
      %1060 = vmatprep.mubr.f32.mxu0 0.0
      %1061 = vmatmul.mubr.f32.gmra.mrb[0].mxu0 %v681
      %v1062 = vpop.f32.mrb[0].mxu0
      %v1063 = vadd.f32 %v964, %v1062
      %v1064 = vpop.f32.mrb[0].mxu0
      %1065 = vmatprep.mubr.f32.mxu0 0.0
      %1066 = vmatmul.mubr.f32.gmra.mrb[0].mxu0 %v684
      %v1067 = vpop.f32.mrb[0].mxu0
      %v1068 = vadd.f32 %v964, %v1067
      %v1069 = vpop.f32.mrb[0].mxu0
      %1070 = vmatprep.mubr.f32.mxu0 0.0
      %1071 = vmatmul.mubr.f32.gmra.mrb[0].mxu0 %v687
      %v1072 = vpop.f32.mrb[0].mxu0
      %v1073 = vadd.f32 %v964, %v1072
      %v1074 = vpop.f32.mrb[0].mxu0
      %1075 = vmatprep.mubr.f32.mxu0 0.0
      %1076 = vmatmul.mubr.f32.gmra.mrb[0].mxu0 %v690
      %v1077 = vpop.f32.mrb[0].mxu0
      %v1078 = vadd.f32 %v964, %v1077
      %v1079 = vpop.f32.mrb[0].mxu0
      %1080 = vmatprep.mubr.f32.mxu0 0.0
      %1081 = vmatmul.mubr.f32.gmra.mrb[0].mxu0 %v693
      %v1082 = vpop.f32.mrb[0].mxu0
      %v1083 = vadd.f32 %v964, %v1082
      %v1084 = vpop.f32.mrb[0].mxu0
      %1085 = vmatprep.mubr.f32.mxu0 0.0
      %1086 = vmatmul.mubr.f32.gmra.mrb[0].mxu0 %v696
      %v1087 = vpop.f32.mrb[0].mxu0
      %v1088 = vadd.f32 %v964, %v1087
      %v1089 = vpop.f32.mrb[0].mxu0
      %1090 = vmatprep.mubr.f32.mxu0 0.0
      %1091 = vmatmul.mubr.f32.gmra.mrb[0].mxu0 %v699
      %v1092 = vpop.f32.mrb[0].mxu0
      %v1093 = vadd.f32 %v964, %v1092
      %v1094 = vpop.f32.mrb[0].mxu0
      %1095 = vmatprep.mubr.f32.mxu0 0.0
      %1096 = vmatmul.mubr.f32.gmra.mrb[0].mxu0 %v702
      %v1097 = vpop.f32.mrb[0].mxu0
      %v1098 = vadd.f32 %v964, %v1097
      %v1099 = vpop.f32.mrb[0].mxu0
      %1100 = vmatprep.mubr.f32.mxu0 0.0
      %1101 = vmatmul.mubr.f32.gmra.mrb[0].mxu0 %v705
      %v1102 = vpop.f32.mrb[0].mxu0
      %v1103 = vadd.f32 %v964, %v1102
      %v1104 = vpop.f32.mrb[0].mxu0
      %1105 = vmatprep.mubr.f32.mxu0 0.0
      %1106 = vmatmul.mubr.f32.gmra.mrb[0].mxu0 %v708
      %v1107 = vpop.f32.mrb[0].mxu0
      %v1108 = vadd.f32 %v964, %v1107
      %v1109 = vpop.f32.mrb[0].mxu0
      %1110 = vdwg.mxu0
      %v1111 = vxor.u32 %v1033, 2147483648
      %v1112 = vxor.u32 %v1038, 2147483648
      %v1113 = vxor.u32 %v1043, 2147483648
      %v1114 = vxor.u32 %v1048, 2147483648
      %v1115 = vxor.u32 %v1053, 2147483648
      %v1116 = vxor.u32 %v1058, 2147483648
      %v1117 = vxor.u32 %v1063, 2147483648
      %v1118 = vxor.u32 %v1068, 2147483648
      %v1119 = vxor.u32 %v1073, 2147483648
      %v1120 = vxor.u32 %v1078, 2147483648
      %v1121 = vxor.u32 %v1083, 2147483648
      %v1122 = vxor.u32 %v1088, 2147483648
      %v1123 = vxor.u32 %v1093, 2147483648
      %v1124 = vxor.u32 %v1098, 2147483648
      %v1125 = vxor.u32 %v1103, 2147483648
      %v1126 = vxor.u32 %v1108, 2147483648
      %v1127 = vmul.f32 %v1111, 1.442695
      %v1128 = vpow.pop %v1127
      %v1129 = vmul.f32 %v1112, 1.442695
      %v1130 = vpow.pop %v1129
      %v1131 = vmul.f32 %v1113, 1.442695
      %v1132 = vpow.pop %v1131
      %v1133 = vmul.f32 %v1114, 1.442695
      %v1134 = vpow.pop %v1133
      %v1135 = vmul.f32 %v1115, 1.442695
      %v1136 = vpow.pop %v1135
      %v1137 = vmul.f32 %v1116, 1.442695
      %v1138 = vpow.pop %v1137
      %v1139 = vmul.f32 %v1117, 1.442695
      %v1140 = vpow.pop %v1139
      %v1141 = vmul.f32 %v1118, 1.442695
      %v1142 = vpow.pop %v1141
      %v1143 = vmul.f32 %v1119, 1.442695
      %v1144 = vpow.pop %v1143
      %v1145 = vmul.f32 %v1120, 1.442695
      %v1146 = vpow.pop %v1145
      %v1147 = vmul.f32 %v1121, 1.442695
      %v1148 = vpow.pop %v1147
      %v1149 = vmul.f32 %v1122, 1.442695
      %v1150 = vpow.pop %v1149
      %v1151 = vmul.f32 %v1123, 1.442695
      %v1152 = vpow.pop %v1151
      %v1153 = vmul.f32 %v1124, 1.442695
      %v1154 = vpow.pop %v1153
      %v1155 = vmul.f32 %v1125, 1.442695
      %v1156 = vpow.pop %v1155
      %v1157 = vmul.f32 %v1126, 1.442695
      %v1158 = vpow.pop %v1157
      %v1159 = vadd.f32 %v1128, 1.0
      %v1160 = vadd.f32 %v1130, 1.0
      %v1161 = vadd.f32 %v1132, 1.0
      %v1162 = vadd.f32 %v1134, 1.0
      %v1163 = vadd.f32 %v1136, 1.0
      %v1164 = vadd.f32 %v1138, 1.0
      %v1165 = vadd.f32 %v1140, 1.0
      %v1166 = vadd.f32 %v1142, 1.0
      %v1167 = vadd.f32 %v1144, 1.0
      %v1168 = vadd.f32 %v1146, 1.0
      %v1169 = vadd.f32 %v1148, 1.0
      %v1170 = vadd.f32 %v1150, 1.0
      %v1171 = vadd.f32 %v1152, 1.0
      %v1172 = vadd.f32 %v1154, 1.0
      %v1173 = vadd.f32 %v1156, 1.0
      %v1174 = vadd.f32 %v1158, 1.0
      %v1175 = vrcp.pop %v1159
      %v1176 = vmul.f32 1.0, %v1175
      %v1177 = vrcp.pop %v1160
      %v1178 = vmul.f32 1.0, %v1177
      %v1179 = vrcp.pop %v1161
      %v1180 = vmul.f32 1.0, %v1179
      %v1181 = vrcp.pop %v1162
      %v1182 = vmul.f32 1.0, %v1181
      %v1183 = vrcp.pop %v1163
      %v1184 = vmul.f32 1.0, %v1183
      %v1185 = vrcp.pop %v1164
      %v1186 = vmul.f32 1.0, %v1185
      %v1187 = vrcp.pop %v1165
      %v1188 = vmul.f32 1.0, %v1187
      %v1189 = vrcp.pop %v1166
      %v1190 = vmul.f32 1.0, %v1189
      %v1191 = vrcp.pop %v1167
      %v1192 = vmul.f32 1.0, %v1191
      %v1193 = vrcp.pop %v1168
      %v1194 = vmul.f32 1.0, %v1193
      %v1195 = vrcp.pop %v1169
      %v1196 = vmul.f32 1.0, %v1195
      %v1197 = vrcp.pop %v1170
      %v1198 = vmul.f32 1.0, %v1197
      %v1199 = vrcp.pop %v1171
      %v1200 = vmul.f32 1.0, %v1199
      %v1201 = vrcp.pop %v1172
      %v1202 = vmul.f32 1.0, %v1201
      %v1203 = vrcp.pop %v1173
      %v1204 = vmul.f32 1.0, %v1203
      %v1205 = vrcp.pop %v1174
      %v1206 = vmul.f32 1.0, %v1205
      %vm1207 = vcmask 23552
      %1208 = vst.msk [vmem:[%s397] sm:$0xff] %vm1207, %v920
      %1209 = vst.msk [vmem:[%s397 + $0x8] sm:$0xff] %vm1207, %v922
      %1210 = vst.msk [vmem:[%s397 + $0x10] sm:$0xff] %vm1207, %v924
      %1211 = vst.msk [vmem:[%s397 + $0x18] sm:$0xff] %vm1207, %v926
      %1212 = vst.msk [vmem:[%s397 + $0x20] sm:$0xff] %vm1207, %v928
      %1213 = vst.msk [vmem:[%s397 + $0x28] sm:$0xff] %vm1207, %v930
      %1214 = vst.msk [vmem:[%s397 + $0x30] sm:$0xff] %vm1207, %v932
      %1215 = vst.msk [vmem:[%s397 + $0x38] sm:$0xff] %vm1207, %v934
      %1216 = vst.msk [vmem:[%s397 + $0x40] sm:$0xff] %vm1207, %v936
      %1217 = vst.msk [vmem:[%s397 + $0x48] sm:$0xff] %vm1207, %v938
      %1218 = vst.msk [vmem:[%s397 + $0x50] sm:$0xff] %vm1207, %v940
      %1219 = vst.msk [vmem:[%s397 + $0x58] sm:$0xff] %vm1207, %v942
      %1220 = vst.msk [vmem:[%s397 + $0x60] sm:$0xff] %vm1207, %v944
      %1221 = vst.msk [vmem:[%s397 + $0x68] sm:$0xff] %vm1207, %v946
      %1222 = vst.msk [vmem:[%s397 + $0x70] sm:$0xff] %vm1207, %v948
      %1223 = vst.msk [vmem:[%s397 + $0x78] sm:$0xff] %vm1207, %v950
      %1224 = vst.msk [vmem:[%s403] sm:$0xff] %vm1207, %v1176
      %1225 = vst.msk [vmem:[%s403 + $0x8] sm:$0xff] %vm1207, %v1178
      %1226 = vst.msk [vmem:[%s403 + $0x10] sm:$0xff] %vm1207, %v1180
      %1227 = vst.msk [vmem:[%s403 + $0x18] sm:$0xff] %vm1207, %v1182
      %1228 = vst.msk [vmem:[%s403 + $0x20] sm:$0xff] %vm1207, %v1184
      %1229 = vst.msk [vmem:[%s403 + $0x28] sm:$0xff] %vm1207, %v1186
      %1230 = vst.msk [vmem:[%s403 + $0x30] sm:$0xff] %vm1207, %v1188
      %1231 = vst.msk [vmem:[%s403 + $0x38] sm:$0xff] %vm1207, %v1190
      %1232 = vst.msk [vmem:[%s403 + $0x40] sm:$0xff] %vm1207, %v1192
      %1233 = vst.msk [vmem:[%s403 + $0x48] sm:$0xff] %vm1207, %v1194
      %1234 = vst.msk [vmem:[%s403 + $0x50] sm:$0xff] %vm1207, %v1196
      %1235 = vst.msk [vmem:[%s403 + $0x58] sm:$0xff] %vm1207, %v1198
      %1236 = vst.msk [vmem:[%s403 + $0x60] sm:$0xff] %vm1207, %v1200
      %1237 = vst.msk [vmem:[%s403 + $0x68] sm:$0xff] %vm1207, %v1202
      %1238 = vst.msk [vmem:[%s403 + $0x70] sm:$0xff] %vm1207, %v1204
      %1239 = vst.msk [vmem:[%s403 + $0x78] sm:$0xff] %vm1207, %v1206
      %s1240 = smul.u32 %s22, 128
      %v1241 = vlaneseq
      %v1242 = vshrl.u32 %v1241, 7
      %v1243 = vadd.s32 %v1242, 8
      %v1244 = vadd.s32 %v1242, 16
      %v1245 = vadd.s32 %v1242, 24
      %v1246 = vadd.s32 %v1242, 32
      %v1247 = vadd.s32 %v1242, 40
      %v1248 = vadd.s32 %v1242, 48
      %v1249 = vadd.s32 %v1242, 56
      %v1250 = vadd.s32 %v1242, 64
      %v1251 = vadd.s32 %v1242, 72
      %v1252 = vadd.s32 %v1242, 80
      %v1253 = vadd.s32 %v1242, 88
      %v1254 = vadd.s32 %v1242, 96
      %v1255 = vadd.s32 %v1242, 104
      %v1256 = vadd.s32 %v1242, 112
      %v1257 = vadd.s32 %v1242, 120
      %v1258 = vstv %s1240
      %v1259 = vadd.s32 %v1258, %v1242
      %v1260 = vadd.s32 %v1258, %v1243
      %v1261 = vadd.s32 %v1258, %v1244
      %v1262 = vadd.s32 %v1258, %v1245
      %v1263 = vadd.s32 %v1258, %v1246
      %v1264 = vadd.s32 %v1258, %v1247
      %v1265 = vadd.s32 %v1258, %v1248
      %v1266 = vadd.s32 %v1258, %v1249
      %v1267 = vadd.s32 %v1258, %v1250
      %v1268 = vadd.s32 %v1258, %v1251
      %v1269 = vadd.s32 %v1258, %v1252
      %v1270 = vadd.s32 %v1258, %v1253
      %v1271 = vadd.s32 %v1258, %v1254
      %v1272 = vadd.s32 %v1258, %v1255
      %v1273 = vadd.s32 %v1258, %v1256
      %v1274 = vadd.s32 %v1258, %v1257
      %vm1275 = vcmp.lt.s32.totalorder %v1259, 256
      %vm1276 = vcmp.lt.s32.totalorder %v1260, 256
      %vm1277 = vcmp.lt.s32.totalorder %v1261, 256
      %vm1278 = vcmp.lt.s32.totalorder %v1262, 256
      %vm1279 = vcmp.lt.s32.totalorder %v1263, 256
      %vm1280 = vcmp.lt.s32.totalorder %v1264, 256
      %vm1281 = vcmp.lt.s32.totalorder %v1265, 256
      %vm1282 = vcmp.lt.s32.totalorder %v1266, 256
      %vm1283 = vcmp.lt.s32.totalorder %v1267, 256
      %vm1284 = vcmp.lt.s32.totalorder %v1268, 256
      %vm1285 = vcmp.lt.s32.totalorder %v1269, 256
      %vm1286 = vcmp.lt.s32.totalorder %v1270, 256
      %vm1287 = vcmp.lt.s32.totalorder %v1271, 256
      %vm1288 = vcmp.lt.s32.totalorder %v1272, 256
      %vm1289 = vcmp.lt.s32.totalorder %v1273, 256
      %vm1290 = vcmp.lt.s32.totalorder %v1274, 256
      %v1291 = vsel %vm1275, 1, 0
      %v1292 = vsel %vm1276, 1, 0
      %v1293 = vsel %vm1277, 1, 0
      %v1294 = vsel %vm1278, 1, 0
      %v1295 = vsel %vm1279, 1, 0
      %v1296 = vsel %vm1280, 1, 0
      %v1297 = vsel %vm1281, 1, 0
      %v1298 = vsel %vm1282, 1, 0
      %v1299 = vsel %vm1283, 1, 0
      %v1300 = vsel %vm1284, 1, 0
      %v1301 = vsel %vm1285, 1, 0
      %v1302 = vsel %vm1286, 1, 0
      %v1303 = vsel %vm1287, 1, 0
      %v1304 = vsel %vm1288, 1, 0
      %v1305 = vsel %vm1289, 1, 0
      %v1306 = vsel %vm1290, 1, 0
      %v1307 = vcvt.s32.f32 %v1291
      %v1308 = vcvt.s32.f32 %v1292
      %v1309 = vcvt.s32.f32 %v1293
      %v1310 = vcvt.s32.f32 %v1294
      %v1311 = vcvt.s32.f32 %v1295
      %v1312 = vcvt.s32.f32 %v1296
      %v1313 = vcvt.s32.f32 %v1297
      %v1314 = vcvt.s32.f32 %v1298
      %v1315 = vcvt.s32.f32 %v1299
      %v1316 = vcvt.s32.f32 %v1300
      %v1317 = vcvt.s32.f32 %v1301
      %v1318 = vcvt.s32.f32 %v1302
      %v1319 = vcvt.s32.f32 %v1303
      %v1320 = vcvt.s32.f32 %v1304
      %v1321 = vcvt.s32.f32 %v1305
      %v1322 = vcvt.s32.f32 %v1306
      %v1323 = vld [vmem:[%s391] sm:$0xff]
      %v1324 = vld [vmem:[%s391 + $0x8] sm:$0xff]
      %v1325 = vld [vmem:[%s391 + $0x10] sm:$0xff]
      %v1326 = vld [vmem:[%s391 + $0x18] sm:$0xff]
      %v1327 = vld [vmem:[%s391 + $0x20] sm:$0xff]
      %v1328 = vld [vmem:[%s391 + $0x28] sm:$0xff]
      %v1329 = vld [vmem:[%s391 + $0x30] sm:$0xff]
      %v1330 = vld [vmem:[%s391 + $0x38] sm:$0xff]
      %v1331 = vld [vmem:[%s391 + $0x40] sm:$0xff]
      %v1332 = vld [vmem:[%s391 + $0x48] sm:$0xff]
      %v1333 = vld [vmem:[%s391 + $0x50] sm:$0xff]
      %v1334 = vld [vmem:[%s391 + $0x58] sm:$0xff]
      %v1335 = vld [vmem:[%s391 + $0x60] sm:$0xff]
      %v1336 = vld [vmem:[%s391 + $0x68] sm:$0xff]
      %v1337 = vld [vmem:[%s391 + $0x70] sm:$0xff]
      %v1338 = vld [vmem:[%s391 + $0x78] sm:$0xff]
      %v1339 = vsub.f32 %v920, %v1323
      %v1340 = vsub.f32 %v922, %v1324
      %v1341 = vsub.f32 %v924, %v1325
      %v1342 = vsub.f32 %v926, %v1326
      %v1343 = vsub.f32 %v928, %v1327
      %v1344 = vsub.f32 %v930, %v1328
      %v1345 = vsub.f32 %v932, %v1329
      %v1346 = vsub.f32 %v934, %v1330
      %v1347 = vsub.f32 %v936, %v1331
      %v1348 = vsub.f32 %v938, %v1332
      %v1349 = vsub.f32 %v940, %v1333
      %v1350 = vsub.f32 %v942, %v1334
      %v1351 = vsub.f32 %v944, %v1335
      %v1352 = vsub.f32 %v946, %v1336
      %v1353 = vsub.f32 %v948, %v1337
      %v1354 = vsub.f32 %v950, %v1338
      %v1355 = vmul.f32 %v1339, %v1307
      %v1356 = vmul.f32 %v1340, %v1308
      %v1357 = vmul.f32 %v1341, %v1309
      %v1358 = vmul.f32 %v1342, %v1310
      %v1359 = vmul.f32 %v1343, %v1311
      %v1360 = vmul.f32 %v1344, %v1312
      %v1361 = vmul.f32 %v1345, %v1313
      %v1362 = vmul.f32 %v1346, %v1314
      %v1363 = vmul.f32 %v1347, %v1315
      %v1364 = vmul.f32 %v1348, %v1316
      %v1365 = vmul.f32 %v1349, %v1317
      %v1366 = vmul.f32 %v1350, %v1318
      %v1367 = vmul.f32 %v1351, %v1319
      %v1368 = vmul.f32 %v1352, %v1320
      %v1369 = vmul.f32 %v1353, %v1321
      %v1370 = vmul.f32 %v1354, %v1322
      %v1371 = vsub.f32 %v1176, %v1323
      %v1372 = vsub.f32 %v1178, %v1324
      %v1373 = vsub.f32 %v1180, %v1325
      %v1374 = vsub.f32 %v1182, %v1326
      %v1375 = vsub.f32 %v1184, %v1327
      %v1376 = vsub.f32 %v1186, %v1328
      %v1377 = vsub.f32 %v1188, %v1329
      %v1378 = vsub.f32 %v1190, %v1330
      %v1379 = vsub.f32 %v1192, %v1331
      %v1380 = vsub.f32 %v1194, %v1332
      %v1381 = vsub.f32 %v1196, %v1333
      %v1382 = vsub.f32 %v1198, %v1334
      %v1383 = vsub.f32 %v1200, %v1335
      %v1384 = vsub.f32 %v1202, %v1336
      %v1385 = vsub.f32 %v1204, %v1337
      %v1386 = vsub.f32 %v1206, %v1338
      %v1387 = vmul.f32 %v1371, %v1307
      %v1388 = vmul.f32 %v1372, %v1308
      %v1389 = vmul.f32 %v1373, %v1309
      %v1390 = vmul.f32 %v1374, %v1310
      %v1391 = vmul.f32 %v1375, %v1311
      %v1392 = vmul.f32 %v1376, %v1312
      %v1393 = vmul.f32 %v1377, %v1313
      %v1394 = vmul.f32 %v1378, %v1314
      %v1395 = vmul.f32 %v1379, %v1315
      %v1396 = vmul.f32 %v1380, %v1316
      %v1397 = vmul.f32 %v1381, %v1317
      %v1398 = vmul.f32 %v1382, %v1318
      %v1399 = vmul.f32 %v1383, %v1319
      %v1400 = vmul.f32 %v1384, %v1320
      %v1401 = vmul.f32 %v1385, %v1321
      %v1402 = vmul.f32 %v1386, %v1322
      %v1403 = vmul.f32 %v1355, %v1355
      %v1404 = vmul.f32 %v1356, %v1356
      %v1405 = vmul.f32 %v1357, %v1357
      %v1406 = vmul.f32 %v1358, %v1358
      %v1407 = vmul.f32 %v1359, %v1359
      %v1408 = vmul.f32 %v1360, %v1360
      %v1409 = vmul.f32 %v1361, %v1361
      %v1410 = vmul.f32 %v1362, %v1362
      %v1411 = vmul.f32 %v1363, %v1363
      %v1412 = vmul.f32 %v1364, %v1364
      %v1413 = vmul.f32 %v1365, %v1365
      %v1414 = vmul.f32 %v1366, %v1366
      %v1415 = vmul.f32 %v1367, %v1367
      %v1416 = vmul.f32 %v1368, %v1368
      %v1417 = vmul.f32 %v1369, %v1369
      %v1418 = vmul.f32 %v1370, %v1370
      %v1419 = vsel %vm1207, %v1403, 0.0
      %v1420 = vsel %vm1207, %v1404, 0.0
      %v1421 = vadd.f32 %v1419, %v1420
      %v1422 = vsel %vm1207, %v1405, 0.0
      %v1423 = vadd.f32 %v1421, %v1422
      %v1424 = vsel %vm1207, %v1406, 0.0
      %v1425 = vadd.f32 %v1423, %v1424
      %v1426 = vsel %vm1207, %v1407, 0.0
      %v1427 = vadd.f32 %v1425, %v1426
      %v1428 = vsel %vm1207, %v1408, 0.0
      %v1429 = vadd.f32 %v1427, %v1428
      %v1430 = vsel %vm1207, %v1409, 0.0
      %v1431 = vadd.f32 %v1429, %v1430
      %v1432 = vsel %vm1207, %v1410, 0.0
      %v1433 = vadd.f32 %v1431, %v1432
      %v1434 = vsel %vm1207, %v1411, 0.0
      %v1435 = vadd.f32 %v1433, %v1434
      %v1436 = vsel %vm1207, %v1412, 0.0
      %v1437 = vadd.f32 %v1435, %v1436
      %v1438 = vsel %vm1207, %v1413, 0.0
      %v1439 = vadd.f32 %v1437, %v1438
      %v1440 = vsel %vm1207, %v1414, 0.0
      %v1441 = vadd.f32 %v1439, %v1440
      %v1442 = vsel %vm1207, %v1415, 0.0
      %v1443 = vadd.f32 %v1441, %v1442
      %v1444 = vsel %vm1207, %v1416, 0.0
      %v1445 = vadd.f32 %v1443, %v1444
      %v1446 = vsel %vm1207, %v1417, 0.0
      %v1447 = vadd.f32 %v1445, %v1446
      %v1448 = vsel %vm1207, %v1418, 0.0
      %v1449 = vadd.f32 %v1447, %v1448
      %1450 = vadd.xlane.f32.xlu0 %v1449
      %v1451 = vpop.xlane.xlu0 %1450
      %v1452 = vrot.slane %v1451, 4
      %v1453 = vadd.f32 %v1451, %v1452
      %v1454 = vrot.slane %v1453, 2
      %v1455 = vadd.f32 %v1453, %v1454
      %v1456 = vrot.slane %v1455, 1
      %v1457 = vadd.f32 %v1455, %v1456
      %s1458 = vtos %v1457
      %v1459 = vmul.f32 %v1387, %v1387
      %v1460 = vmul.f32 %v1388, %v1388
      %v1461 = vmul.f32 %v1389, %v1389
      %v1462 = vmul.f32 %v1390, %v1390
      %v1463 = vmul.f32 %v1391, %v1391
      %v1464 = vmul.f32 %v1392, %v1392
      %v1465 = vmul.f32 %v1393, %v1393
      %v1466 = vmul.f32 %v1394, %v1394
      %v1467 = vmul.f32 %v1395, %v1395
      %v1468 = vmul.f32 %v1396, %v1396
      %v1469 = vmul.f32 %v1397, %v1397
      %v1470 = vmul.f32 %v1398, %v1398
      %v1471 = vmul.f32 %v1399, %v1399
      %v1472 = vmul.f32 %v1400, %v1400
      %v1473 = vmul.f32 %v1401, %v1401
      %v1474 = vmul.f32 %v1402, %v1402
      %v1475 = vsel %vm1207, %v1459, 0.0
      %v1476 = vsel %vm1207, %v1460, 0.0
      %v1477 = vadd.f32 %v1475, %v1476
      %v1478 = vsel %vm1207, %v1461, 0.0
      %v1479 = vadd.f32 %v1477, %v1478
      %v1480 = vsel %vm1207, %v1462, 0.0
      %v1481 = vadd.f32 %v1479, %v1480
      %v1482 = vsel %vm1207, %v1463, 0.0
      %v1483 = vadd.f32 %v1481, %v1482
      %v1484 = vsel %vm1207, %v1464, 0.0
      %v1485 = vadd.f32 %v1483, %v1484
      %v1486 = vsel %vm1207, %v1465, 0.0
      %v1487 = vadd.f32 %v1485, %v1486
      %v1488 = vsel %vm1207, %v1466, 0.0
      %v1489 = vadd.f32 %v1487, %v1488
      %v1490 = vsel %vm1207, %v1467, 0.0
      %v1491 = vadd.f32 %v1489, %v1490
      %v1492 = vsel %vm1207, %v1468, 0.0
      %v1493 = vadd.f32 %v1491, %v1492
      %v1494 = vsel %vm1207, %v1469, 0.0
      %v1495 = vadd.f32 %v1493, %v1494
      %v1496 = vsel %vm1207, %v1470, 0.0
      %v1497 = vadd.f32 %v1495, %v1496
      %v1498 = vsel %vm1207, %v1471, 0.0
      %v1499 = vadd.f32 %v1497, %v1498
      %v1500 = vsel %vm1207, %v1472, 0.0
      %v1501 = vadd.f32 %v1499, %v1500
      %v1502 = vsel %vm1207, %v1473, 0.0
      %v1503 = vadd.f32 %v1501, %v1502
      %v1504 = vsel %vm1207, %v1474, 0.0
      %v1505 = vadd.f32 %v1503, %v1504
      %1506 = vadd.xlane.f32.xlu0 %v1505
      %v1507 = vpop.xlane.xlu0 %1506
      %v1508 = vrot.slane %v1507, 4
      %v1509 = vadd.f32 %v1507, %v1508
      %v1510 = vrot.slane %v1509, 2
      %v1511 = vadd.f32 %v1509, %v1510
      %v1512 = vrot.slane %v1511, 1
      %v1513 = vadd.f32 %v1511, %v1512
      %s1514 = vtos %v1513
      %v1515 = vlaneseq
      %v1516 = vand.u32 %v1515, 127
      %vm1517 = vcmp.eq.s32.totalorder %v1516, 0
      %vm1518 = vcmp.eq.s32.totalorder %v1516, 1
      %v1519 = vstv %s1514
      %v1520 = vsel %vm1518, %v1519, 0.0
      %v1521 = vstv %s1458
      %v1522 = vsel %vm1517, %v1521, %v1520
      %1523 = vst [vmem:[%s408] sm:$0xff] %v1522
      %s1524 = smul.u32 16, %s22
      %p1525 = scmp.lt.s32.totalorder %s1524, 31
      %s1526 = scalar_select %p1525, %s1524, 31
      %s1527 = smul.addr %s1526, 8
      %s1528 = scalar_lea.vmem %s8, %s1527
      %s1529 = smul.u32 16, %s22
      %p1530 = scmp.lt.s32.totalorder %s1529, 31
      %s1531 = scalar_select %p1530, %s1529, 31
      %s1532 = smul.addr %s1531, 8
      %s1533 = scalar_lea.vmem %s9, %s1532
      %p1534 = scmp.lt.s32.totalorder %s22, 1
      %s1535 = scalar_select %p1534, %s22, 1
      %s1536 = smul.addr %s1535, 8
      %s1537 = scalar_lea.vmem %s10, %s1536
      // Predicated region
      $region53: #{_forward_impl.1} parent=51 // pred_check
        %p1538 = pneg %p218
      $region54: #{_forward_impl.1} parent=51 // pred_check_branch
        %1540 = sbr.rel (%p1538) target = $region56
      $region55: #{_forward_impl.1} parent=51 // pred_region
        %s1541 = smul.u32 16, %s22
      $region56: #{_forward_impl.1} parent=51 // pred_fallthru
        _
      // Predicated region
      $region57: #{_forward_impl.1} parent=51 // pred_check
        %p1542 = pneg %p244
      $region58: #{_forward_impl.1} parent=51 // pred_check_branch
        %1544 = sbr.rel (%p1542) target = $region60
      $region59: #{_forward_impl.1} parent=51 // pred_region
        %s1545 = smul.u32 16, %s22
      $region60: #{_forward_impl.1} parent=51 // pred_fallthru
        _
      // Predicated region
      $region61: #{_forward_impl.1} parent=51 // pred_check
        %p1546 = pneg %p270
      $region62: #{_forward_impl.1} parent=51 // pred_check_branch
        %1548 = sbr.rel (%p1546) target = $region64
      $region63: #{_forward_impl.1} parent=51 // pred_region
        _
      $region64: #{_forward_impl.1} parent=51 // pred_fallthru
        _
    $region52: #{_forward_impl.1} parent=5 // pred_fallthru
      _
    %p1549 = scmp.le.s32.totalorder 2, %s17
    // Predicated region
    $region65: #{_forward_impl.1} parent=5 // pred_check
      %p1550 = pneg %p1549
    $region66: #{_forward_impl.1} parent=5 // pred_check_branch
      %1552 = sbr.rel (%p1550) target = $region68
    $region67: #{_forward_impl.1} parent=5 // pred_region
      %s1553 = ssub.s32 %s17, 2
      // Predicated region
      $region69: #{_forward_impl.1} parent=67 // pred_check
        %p1554 = pneg %p224
      $region70: #{_forward_impl.1} parent=67 // pred_check_branch
        %1556 = sbr.rel (%p1554) target = $region72
      $region71: #{_forward_impl.1} parent=67 // pred_region
        %s1557 = smul.u32 16, %s23
        %p1558 = scmp.lt.s32.totalorder %s1557, 31
        %s1559 = scalar_select %p1558, %s1557, 31
        %s1560 = smul.addr %s1559, 8
        %s1561 = scalar_lea.vmem %s8, %s1560
      $region72: #{_forward_impl.1} parent=67 // pred_fallthru
        _
      // Predicated region
      $region73: #{_forward_impl.1} parent=67 // pred_check
        %p1562 = pneg %p250
      $region74: #{_forward_impl.1} parent=67 // pred_check_branch
        %1564 = sbr.rel (%p1562) target = $region76
      $region75: #{_forward_impl.1} parent=67 // pred_region
        %s1565 = smul.u32 16, %s23
        %p1566 = scmp.lt.s32.totalorder %s1565, 31
        %s1567 = scalar_select %p1566, %s1565, 31
        %s1568 = smul.addr %s1567, 8
        %s1569 = scalar_lea.vmem %s9, %s1568
      $region76: #{_forward_impl.1} parent=67 // pred_fallthru
        _
      // Predicated region
      $region77: #{_forward_impl.1} parent=67 // pred_check
        %p1570 = pneg %p276
      $region78: #{_forward_impl.1} parent=67 // pred_check_branch
        %1572 = sbr.rel (%p1570) target = $region80
      $region79: #{_forward_impl.1} parent=67 // pred_region
        %p1573 = scmp.lt.s32.totalorder %s23, 1
        %s1574 = scalar_select %p1573, %s23, 1
        %s1575 = smul.addr %s1574, 8
        %s1576 = scalar_lea.vmem %s10, %s1575
      $region80: #{_forward_impl.1} parent=67 // pred_fallthru
        _
    $region68: #{_forward_impl.1} parent=5 // pred_fallthru
      _
  $region6: #{_forward_impl.1} parent=0 // loop_footer
    %s21 = sadd.s32 1, %s17
  $region7: #{_forward_impl.1} parent=0 // loop_footer_branch
    %16 = sbr.rel target = $region3
  $region8: #{_forward_impl.1} parent=0 // loop_exit
    _

</llo_original>
